<compile_context>
chip_gen: v7x
topology: tpu7x:2x2x1
jax: 0.10.0
libtpu: 0.0.40
codegen_flags: <defaults>
</compile_context>

<pallas_src>
import jax
import jax.numpy as jnp
from jax.experimental import pallas as pl
from jax.experimental.pallas import tpu as pltpu
from jax.scipy.linalg import block_diag


def _round_up(n, m):
    return ((n + m - 1) // m) * m


# ----------------------------------------------------------------------------- kernel


def _make_ppnet_kernel(n_layers, seg_widths):
    """All domains, all layers, fused matmuls, one batch tile per grid step.

    seg_widths = [P0 (main layer-0 segment), P0 (gateA layer-0), P1 (gateA layer-1), ...]
    All segment widths are multiples of 128 so in-kernel slices stay lane-aligned.
    """

    def kernel(x_ref, *refs):
        out_ref = refs[-1]
        p = refs[:-1]
        x = x_ref[...]                                            # (TB, Din)

        # One wide MXU call covers: layer-0 main linear for every domain plus
        # every GateNU first linear for every layer and every domain.
        z = jnp.dot(x, p[0][...], preferred_element_type=jnp.float32) + p[1][...]

        hidden = jnp.maximum(z[:, : seg_widths[0]], 0.0)          # relu(BN-folded layer-0)
        off = seg_widths[0]
        idx = 2
        for i in range(n_layers):
            w = seg_widths[1 + i]
            gate_h = jnp.maximum(z[:, off:off + w], 0.0)          # relu(GateNU hidden), all domains
            off += w
            if i > 0:
                wm, bm = p[idx][...], p[idx + 1][...]
                idx += 2
                hidden = jnp.maximum(
                    jnp.dot(hidden, wm, preferred_element_type=jnp.float32) + bm, 0.0)
            gw, gb = p[idx][...], p[idx + 1][...]
            idx += 2
            gate = 2.0 * jax.nn.sigmoid(
                jnp.dot(gate_h, gw, preferred_element_type=jnp.float32) + gb)
            hidden = hidden * gate                                # per-domain blocks stay aligned

        wf, bf = p[idx][...], p[idx + 1][...]
        out_ref[...] = jax.nn.sigmoid(
            jnp.dot(hidden, wf, preferred_element_type=jnp.float32) + bf)

    return kernel


# ----------------------------------------------------------------------------- packing


def pack_ppnet_params(params, input_dims, fcn_dims, domain_num):
    """Fold BN into the linears and pack per-domain params into a few dense 2-D blocks.

    Returns (packed_list, seg_widths, pad_out).  Column layout of the fused input
    weight: [ main layer-0 (per domain) | GateNU-A layer-0 | ... | GateNU-A layer-(L-1) ],
    each segment zero-padded to a multiple of 128 lanes.
    """
    dims = [input_dims] + list(fcn_dims)
    L, D = len(fcn_dims), domain_num
    P = [_round_up(D * dims[i + 1], 128) for i in range(L)]
    pad_out = _round_up(D, 128)

    def cat_d(a):                        # (D, r, c) -> (r, D*c)
        return jnp.concatenate([a[d] for d in range(D)], axis=1)

    def pad_c(m, w):                     # zero-pad columns up to width w
        return jnp.pad(m, ((0, 0), (0, w - m.shape[1])))

    folded = []
    idx = 0
    for i in range(L):
        w, b, s, t, gwa, gba, gwb, gbb = params[idx:idx + 8]
        idx += 8
        folded.append((w * s, b * s + t, gwa, gba, gwb, gbb))     # BN folded into Linear
    wfin, bfin = params[idx], params[idx + 1]

    # Fused input matmul (everything that consumes gate_input).
    Wsegs = [pad_c(cat_d(folded[0][0]), P[0])]
    bsegs = [pad_c(cat_d(folded[0][1]), P[0])]
    for i in range(L):
        Wsegs.append(pad_c(cat_d(folded[i][2]), P[i]))
        bsegs.append(pad_c(cat_d(folded[i][3]), P[i]))
    packed = [jnp.concatenate(Wsegs, axis=1), jnp.concatenate(bsegs, axis=1)]
    seg_widths = [P[0]] + P

    # Per-layer block-diagonal weights (all domains in one matmul).
    for i in range(L):
        wm, bm, _, _, gwb, gbb = folded[i]
        if i > 0:
            WM = block_diag(*[wm[d] for d in range(D)])
            WM = jnp.pad(WM, ((0, P[i - 1] - D * dims[i]), (0, P[i] - D * dims[i + 1])))
            packed += [WM, pad_c(cat_d(bm), P[i])]
        GB = block_diag(*[gwb[d] for d in range(D)])
        GB = jnp.pad(GB, ((0, P[i] - D * dims[i + 1]), (0, P[i] - D * dims[i + 1])))
        packed += [GB, pad_c(cat_d(gbb), P[i])]

    # Final per-domain (h_L -> 1) linears fused into one lane-dense block.
    WF = block_diag(*[wfin[d] for d in range(D)])                  # (D*h_L, D)
    WF = jnp.pad(WF, ((0, P[L - 1] - D * dims[L]), (0, pad_out - D)))
    BF = pad_c(cat_d(bfin), pad_out)
    packed += [WF, BF]
    return packed, seg_widths, pad_out


# ----------------------------------------------------------------------------- wrapper


def ppnet_towers(domain_ids, gate_input, params, domain_num, fcn_dims, batch_tile=None):
    """domain_ids: (B, 1) int32, gate_input: (B, Din) f32, params: module-format list."""
    B, Din = gate_input.shape
    packed, seg_widths, pad_out = pack_ppnet_params(params, Din, fcn_dims, domain_num)

    # Batch tiling: "parallel" grid axis (megacore-shardable, HBM-pipelined).
    if batch_tile is None:
        batch_tile = min(_round_up(B, 8), 256)
    TB = _round_up(batch_tile, 8)
    B_pad = _round_up(B, TB)
    x_pad = jnp.pad(gate_input, ((0, B_pad - B), (0, 0)))

    in_specs = [pl.BlockSpec((TB, Din), lambda i: (i, 0))]
    for arr in packed:
        # Grid-invariant block index -> fetched once, resident across batch tiles.
        in_specs.append(pl.BlockSpec(arr.shape, lambda i: (0, 0)))

    probs_padded = pl.pallas_call(
        _make_ppnet_kernel(len(fcn_dims), seg_widths),
        out_shape=jax.ShapeDtypeStruct((B_pad, pad_out), jnp.float32),
        grid=(B_pad // TB,),
        in_specs=in_specs,
        out_specs=pl.BlockSpec((TB, pad_out), lambda i: (i, 0)),
        compiler_params=pltpu.CompilerParams(dimension_semantics=("parallel",)),
    )(x_pad, *packed)

    # torch.where(domain_id == d, out_d, final) merge + squeeze(1), done on the
    # lane-dense (B, domain_num) slice in plain JAX (tiny).
    probs = probs_padded[:B, :domain_num]                          # (B, D)
    d = domain_ids[:, 0]
    valid = (d >= 0) & (d < domain_num)
    sel = jnp.take_along_axis(probs, jnp.clip(d, 0, domain_num - 1)[:, None], axis=1)[:, 0]
    return jnp.where(valid, sel, 0.0)


# ----------------------------------------------------------------------------- init + reference


def init_ppnet_params(key, input_dims, fcn_dims, domain_num):
    """Deterministic synthetic init matching the torch module's parameter shapes."""
    dims = [input_dims] + list(fcn_dims)
    eps = 1e-5

    def linear(k, fan_in, fan_out):
        kw, kb = jax.random.split(k)
        bound = 1.0 / jnp.sqrt(jnp.float32(fan_in))
        w = jax.random.uniform(kw, (fan_in, fan_out), jnp.float32, -bound, bound)
        b = jax.random.uniform(kb, (1, fan_out), jnp.float32, -bound, bound)
        return w, b

    params = []
    for i in range(len(dims) - 1):
        lists = [[] for _ in range(8)]
        for _ in range(domain_num):
            key, k1, k2, k3 = jax.random.split(key, 4)
            w, b = linear(k1, dims[i], dims[i + 1])
            gamma = jnp.ones((1, dims[i + 1]), jnp.float32)
            beta = jnp.zeros((1, dims[i + 1]), jnp.float32)
            mean = jnp.zeros((1, dims[i + 1]), jnp.float32)
            var = jnp.ones((1, dims[i + 1]), jnp.float32)
            scale = gamma / jnp.sqrt(var + eps)
            shift = beta - mean * scale
            gwa, gba = linear(k2, dims[0], dims[i + 1])
            gwb, gbb = linear(k3, dims[i + 1], dims[i + 1])
            for lst, v in zip(lists, (w, b, scale, shift, gwa, gba, gwb, gbb)):
                lst.append(v)
        for lst in lists:
            params.append(jnp.stack(lst, axis=0))
    wfs, bfs = [], []
    for _ in range(domain_num):
        key, k = jax.random.split(key)
        wf, bf = linear(k, dims[-1], 1)
        wfs.append(wf)
        bfs.append(bf)
    params.append(jnp.stack(wfs, axis=0))
    params.append(jnp.stack(bfs, axis=0))
    return params


def ppnet_ref(domain_ids, gate_input, params, domain_num, fcn_dims):
    """Pure-JAX reference of the same forward pass (for verification)."""
    n_layers = len(fcn_dims)
    outs = []
    for d in range(domain_num):
        hidden = gate_input
        idx = 0
        for _ in range(n_layers):
            w, b, s, t, gwa, gba, gwb, gbb = [params[idx + j][d] for j in range(8)]
            idx += 8
            h = jnp.maximum((hidden @ w + b) * s + t, 0.0)
            g = 2.0 * jax.nn.sigmoid(jnp.maximum(gate_input @ gwa + gba, 0.0) @ gwb + gbb)
            hidden = h * g
        wf, bf = params[idx][d], params[idx + 1][d]
        outs.append(jax.nn.sigmoid(hidden @ wf + bf))
    final = jnp.zeros_like(outs[0])
    for d in range(domain_num):
        final = jnp.where(domain_ids == d, outs[d], final)
    return final[:, 0]


# ----------------------------------------------------------------------------- test


if __name__ == "__main__":
    key = jax.random.PRNGKey(0)

    B = 24                      # exercises a multi-step "parallel" batch grid (TB=8)
    domain_num = 3
    fcn_dims = [64, 32]
    # (name, vocab_size, embed_dim)
    id_features = [("user_id", 10, 8), ("item_id", 20, 8)]
    agn_features = [("cat_a", 6, 8), ("cat_b", 7, 8)]
    id_dims = sum(e for _, _, e in id_features)
    agn_dims = sum(e for _, _, e in agn_features)
    input_dims = id_dims + agn_dims  # 32

    # Input dict x (integer categorical ids + domain_indicator).
    x = {}
    for name, vocab, _ in id_features + agn_features:
        key, k = jax.random.split(key)
        x[name] = jax.random.randint(k, (B,), 0, vocab)
    key, k = jax.random.split(key)
    x["domain_indicator"] = jax.random.randint(k, (B,), 0, domain_num)

    # EmbeddingLayer glue: deterministic tables + gather in plain JAX.
    # TODO(synk): the embedding gather itself is left to XLA (no clean tiny-vocab Pallas win).
    tables = {}
    for name, vocab, edim in id_features + agn_features:
        key, k = jax.random.split(key)
        tables[name] = 0.1 * jax.random.normal(k, (vocab, edim), jnp.float32)
    id_x = jnp.concatenate([tables[n][x[n]] for n, _, _ in id_features], axis=1)
    agn_x = jnp.concatenate([tables[n][x[n]] for n, _, _ in agn_features], axis=1)
    gate_input = jnp.concatenate([id_x, agn_x], axis=1)   # cat(id_x, agn_x.detach())

    key, kp = jax.random.split(key)
    params = init_ppnet_params(kp, input_dims, fcn_dims, domain_num)

    domain_ids = x["domain_indicator"].astype(jnp.int32)[:, None]  # (B, 1)

    out = ppnet_towers(domain_ids, gate_input, params, domain_num, fcn_dims, batch_tile=8)
    out = jax.block_until_ready(out)

    ref = ppnet_ref(domain_ids, gate_input, params, domain_num, fcn_dims)
    assert out.shape == (B,)
    assert jnp.allclose(out, ref, atol=1e-5, rtol=1e-5)
    print("KERNEL_OK")
</pallas_src>

<mosaic_0001>
module attributes {stable_mosaic.version = 11 : i64} {
  func.func @kernel(%arg0: i32, %arg1: memref<8x32xf32, #tpu.memory_space<vmem>>, %arg2: memref<32x640xf32, #tpu.memory_space<vmem>>, %arg3: memref<1x640xf32, #tpu.memory_space<vmem>>, %arg4: memref<256x256xf32, #tpu.memory_space<vmem>>, %arg5: memref<1x256xf32, #tpu.memory_space<vmem>>, %arg6: memref<256x128xf32, #tpu.memory_space<vmem>>, %arg7: memref<1x128xf32, #tpu.memory_space<vmem>>, %arg8: memref<128x128xf32, #tpu.memory_space<vmem>>, %arg9: memref<1x128xf32, #tpu.memory_space<vmem>>, %arg10: memref<128x128xf32, #tpu.memory_space<vmem>>, %arg11: memref<1x128xf32, #tpu.memory_space<vmem>>, %arg12: memref<8x128xf32, #tpu.memory_space<vmem>>) attributes {dimension_semantics = [#tpu.dimension_semantics<parallel>], iteration_bounds = array<i64: 3>, scalar_prefetch = 0 : i64, scratch_operands = 0 : i64, tpu.core_type = #tpu.core_type<tc>, window_params = [{transform_indices = @transform_0, window_bounds = array<i64: 8, 32>}, {pipeline_mode = #tpu.pipeline_mode<synchronous>, transform_indices = @transform_1, window_bounds = array<i64: 32, 640>}, {pipeline_mode = #tpu.pipeline_mode<synchronous>, transform_indices = @transform_2, window_bounds = array<i64: 1, 640>}, {pipeline_mode = #tpu.pipeline_mode<synchronous>, transform_indices = @transform_3, window_bounds = array<i64: 256, 256>}, {pipeline_mode = #tpu.pipeline_mode<synchronous>, transform_indices = @transform_4, window_bounds = array<i64: 1, 256>}, {pipeline_mode = #tpu.pipeline_mode<synchronous>, transform_indices = @transform_5, window_bounds = array<i64: 256, 128>}, {pipeline_mode = #tpu.pipeline_mode<synchronous>, transform_indices = @transform_6, window_bounds = array<i64: 1, 128>}, {pipeline_mode = #tpu.pipeline_mode<synchronous>, transform_indices = @transform_7, window_bounds = array<i64: 128, 128>}, {pipeline_mode = #tpu.pipeline_mode<synchronous>, transform_indices = @transform_8, window_bounds = array<i64: 1, 128>}, {pipeline_mode = #tpu.pipeline_mode<synchronous>, transform_indices = @transform_9, window_bounds = array<i64: 128, 128>}, {pipeline_mode = #tpu.pipeline_mode<synchronous>, transform_indices = @transform_10, window_bounds = array<i64: 1, 128>}, {transform_indices = @transform_11, window_bounds = array<i64: 8, 128>}]} {
    %c0 = arith.constant 0 : index
    %c0_0 = arith.constant 0 : index
    %0 = vector.load %arg1[%c0, %c0_0] : memref<8x32xf32, #tpu.memory_space<vmem>>, vector<8x32xf32>
    %c0_1 = arith.constant 0 : index
    %c0_2 = arith.constant 0 : index
    %1 = vector.load %arg2[%c0_1, %c0_2] : memref<32x640xf32, #tpu.memory_space<vmem>>, vector<32x640xf32>
    %cst = arith.constant dense<0.000000e+00> : vector<8x640xf32>
    %2 = tpu.matmul %0, %1, %cst {dimension_numbers = #tpu.dot_dimension_numbers<[1], [0], [0], [1], [0, 0, 1, 1], [], []>} : vector<8x32xf32>, vector<32x640xf32>, vector<8x640xf32> -> vector<8x640xf32>
    %c0_3 = arith.constant 0 : index
    %c0_4 = arith.constant 0 : index
    %3 = vector.load %arg3[%c0_3, %c0_4] : memref<1x640xf32, #tpu.memory_space<vmem>>, vector<1x640xf32>
    %4 = vector.broadcast %3 : vector<1x640xf32> to vector<8x640xf32>
    %5 = arith.addf %2, %4 : vector<8x640xf32>
    %6 = vector.extract_strided_slice %5 {offsets = [0, 0], sizes = [8, 256], strides = [1, 1]} : vector<8x640xf32> to vector<8x256xf32>
    %cst_5 = arith.constant 0.000000e+00 : f32
    %7 = vector.broadcast %cst_5 : f32 to vector<8x256xf32>
    %8 = arith.maximumf %6, %7 : vector<8x256xf32>
    %9 = vector.extract_strided_slice %5 {offsets = [0, 256], sizes = [8, 256], strides = [1, 1]} : vector<8x640xf32> to vector<8x256xf32>
    %cst_6 = arith.constant 0.000000e+00 : f32
    %10 = vector.broadcast %cst_6 : f32 to vector<8x256xf32>
    %11 = arith.maximumf %9, %10 : vector<8x256xf32>
    %c0_7 = arith.constant 0 : index
    %c0_8 = arith.constant 0 : index
    %12 = vector.load %arg4[%c0_7, %c0_8] : memref<256x256xf32, #tpu.memory_space<vmem>>, vector<256x256xf32>
    %c0_9 = arith.constant 0 : index
    %c0_10 = arith.constant 0 : index
    %13 = vector.load %arg5[%c0_9, %c0_10] : memref<1x256xf32, #tpu.memory_space<vmem>>, vector<1x256xf32>
    %cst_11 = arith.constant dense<0.000000e+00> : vector<8x256xf32>
    %14 = tpu.matmul %11, %12, %cst_11 {dimension_numbers = #tpu.dot_dimension_numbers<[1], [0], [0], [1], [0, 0, 1, 1], [], []>} : vector<8x256xf32>, vector<256x256xf32>, vector<8x256xf32> -> vector<8x256xf32>
    %15 = vector.broadcast %13 : vector<1x256xf32> to vector<8x256xf32>
    %16 = arith.addf %14, %15 : vector<8x256xf32>
    %17 = arith.negf %16 : vector<8x256xf32>
    %18 = math.exp %17 : vector<8x256xf32>
    %cst_12 = arith.constant 1.000000e+00 : f32
    %19 = vector.broadcast %cst_12 : f32 to vector<8x256xf32>
    %20 = arith.addf %19, %18 : vector<8x256xf32>
    %21 = arith.divf %19, %20 : vector<8x256xf32>
    %cst_13 = arith.constant 2.000000e+00 : f32
    %22 = vector.broadcast %cst_13 : f32 to vector<8x256xf32>
    %23 = arith.mulf %22, %21 : vector<8x256xf32>
    %24 = arith.mulf %8, %23 : vector<8x256xf32>
    %25 = vector.extract_strided_slice %5 {offsets = [0, 512], sizes = [8, 128], strides = [1, 1]} : vector<8x640xf32> to vector<8x128xf32>
    %cst_14 = arith.constant 0.000000e+00 : f32
    %26 = vector.broadcast %cst_14 : f32 to vector<8x128xf32>
    %27 = arith.maximumf %25, %26 : vector<8x128xf32>
    %c0_15 = arith.constant 0 : index
    %c0_16 = arith.constant 0 : index
    %28 = vector.load %arg6[%c0_15, %c0_16] : memref<256x128xf32, #tpu.memory_space<vmem>>, vector<256x128xf32>
    %c0_17 = arith.constant 0 : index
    %c0_18 = arith.constant 0 : index
    %29 = vector.load %arg7[%c0_17, %c0_18] : memref<1x128xf32, #tpu.memory_space<vmem>>, vector<1x128xf32>
    %cst_19 = arith.constant dense<0.000000e+00> : vector<8x128xf32>
    %30 = tpu.matmul %24, %28, %cst_19 {dimension_numbers = #tpu.dot_dimension_numbers<[1], [0], [0], [1], [0, 0, 1, 1], [], []>} : vector<8x256xf32>, vector<256x128xf32>, vector<8x128xf32> -> vector<8x128xf32>
    %31 = vector.broadcast %29 : vector<1x128xf32> to vector<8x128xf32>
    %32 = arith.addf %30, %31 : vector<8x128xf32>
    %cst_20 = arith.constant 0.000000e+00 : f32
    %33 = vector.broadcast %cst_20 : f32 to vector<8x128xf32>
    %34 = arith.maximumf %32, %33 : vector<8x128xf32>
    %c0_21 = arith.constant 0 : index
    %c0_22 = arith.constant 0 : index
    %35 = vector.load %arg8[%c0_21, %c0_22] : memref<128x128xf32, #tpu.memory_space<vmem>>, vector<128x128xf32>
    %c0_23 = arith.constant 0 : index
    %c0_24 = arith.constant 0 : index
    %36 = vector.load %arg9[%c0_23, %c0_24] : memref<1x128xf32, #tpu.memory_space<vmem>>, vector<1x128xf32>
    %cst_25 = arith.constant dense<0.000000e+00> : vector<8x128xf32>
    %37 = tpu.matmul %27, %35, %cst_25 {dimension_numbers = #tpu.dot_dimension_numbers<[1], [0], [0], [1], [0, 0, 1, 1], [], []>} : vector<8x128xf32>, vector<128x128xf32>, vector<8x128xf32> -> vector<8x128xf32>
    %38 = vector.broadcast %36 : vector<1x128xf32> to vector<8x128xf32>
    %39 = arith.addf %37, %38 : vector<8x128xf32>
    %40 = arith.negf %39 : vector<8x128xf32>
    %41 = math.exp %40 : vector<8x128xf32>
    %cst_26 = arith.constant 1.000000e+00 : f32
    %42 = vector.broadcast %cst_26 : f32 to vector<8x128xf32>
    %43 = arith.addf %42, %41 : vector<8x128xf32>
    %44 = arith.divf %42, %43 : vector<8x128xf32>
    %cst_27 = arith.constant 2.000000e+00 : f32
    %45 = vector.broadcast %cst_27 : f32 to vector<8x128xf32>
    %46 = arith.mulf %45, %44 : vector<8x128xf32>
    %47 = arith.mulf %34, %46 : vector<8x128xf32>
    %c0_28 = arith.constant 0 : index
    %c0_29 = arith.constant 0 : index
    %48 = vector.load %arg10[%c0_28, %c0_29] : memref<128x128xf32, #tpu.memory_space<vmem>>, vector<128x128xf32>
    %c0_30 = arith.constant 0 : index
    %c0_31 = arith.constant 0 : index
    %49 = vector.load %arg11[%c0_30, %c0_31] : memref<1x128xf32, #tpu.memory_space<vmem>>, vector<1x128xf32>
    %cst_32 = arith.constant dense<0.000000e+00> : vector<8x128xf32>
    %50 = tpu.matmul %47, %48, %cst_32 {dimension_numbers = #tpu.dot_dimension_numbers<[1], [0], [0], [1], [0, 0, 1, 1], [], []>} : vector<8x128xf32>, vector<128x128xf32>, vector<8x128xf32> -> vector<8x128xf32>
    %51 = vector.broadcast %49 : vector<1x128xf32> to vector<8x128xf32>
    %52 = arith.addf %50, %51 : vector<8x128xf32>
    %53 = arith.negf %52 : vector<8x128xf32>
    %54 = math.exp %53 : vector<8x128xf32>
    %cst_33 = arith.constant 1.000000e+00 : f32
    %55 = vector.broadcast %cst_33 : f32 to vector<8x128xf32>
    %56 = arith.addf %55, %54 : vector<8x128xf32>
    %57 = arith.divf %55, %56 : vector<8x128xf32>
    %c0_34 = arith.constant 0 : index
    %c0_35 = arith.constant 0 : index
    %58 = vector.load %arg12[%c0_34, %c0_35] : memref<8x128xf32, #tpu.memory_space<vmem>>, vector<8x128xf32>
    tpu.vector_store %arg12[%c0_34, %c0_35], %57 {strides = array<i32>} : memref<8x128xf32, #tpu.memory_space<vmem>>, vector<8x128xf32>,
    return
  }
  func.func @transform_0(%arg0: i32) -> (i32, i32) {
    %c0_i32 = arith.constant 0 : i32
    %c0_i32_0 = arith.constant 0 : i32
    return %arg0, %c0_i32 : i32, i32
  }
  func.func @transform_1(%arg0: i32) -> (i32, i32) {
    %c0_i32 = arith.constant 0 : i32
    %c0_i32_0 = arith.constant 0 : i32
    %c0_i32_1 = arith.constant 0 : i32
    return %c0_i32, %c0_i32_0 : i32, i32
  }
  func.func @transform_2(%arg0: i32) -> (i32, i32) {
    %c0_i32 = arith.constant 0 : i32
    %c0_i32_0 = arith.constant 0 : i32
    %c0_i32_1 = arith.constant 0 : i32
    return %c0_i32, %c0_i32_0 : i32, i32
  }
  func.func @transform_3(%arg0: i32) -> (i32, i32) {
    %c0_i32 = arith.constant 0 : i32
    %c0_i32_0 = arith.constant 0 : i32
    %c0_i32_1 = arith.constant 0 : i32
    return %c0_i32, %c0_i32_0 : i32, i32
  }
  func.func @transform_4(%arg0: i32) -> (i32, i32) {
    %c0_i32 = arith.constant 0 : i32
    %c0_i32_0 = arith.constant 0 : i32
    %c0_i32_1 = arith.constant 0 : i32
    return %c0_i32, %c0_i32_0 : i32, i32
  }
  func.func @transform_5(%arg0: i32) -> (i32, i32) {
    %c0_i32 = arith.constant 0 : i32
    %c0_i32_0 = arith.constant 0 : i32
    %c0_i32_1 = arith.constant 0 : i32
    return %c0_i32, %c0_i32_0 : i32, i32
  }
  func.func @transform_6(%arg0: i32) -> (i32, i32) {
    %c0_i32 = arith.constant 0 : i32
    %c0_i32_0 = arith.constant 0 : i32
    %c0_i32_1 = arith.constant 0 : i32
    return %c0_i32, %c0_i32_0 : i32, i32
  }
  func.func @transform_7(%arg0: i32) -> (i32, i32) {
    %c0_i32 = arith.constant 0 : i32
    %c0_i32_0 = arith.constant 0 : i32
    %c0_i32_1 = arith.constant 0 : i32
    return %c0_i32, %c0_i32_0 : i32, i32
  }
  func.func @transform_8(%arg0: i32) -> (i32, i32) {
    %c0_i32 = arith.constant 0 : i32
    %c0_i32_0 = arith.constant 0 : i32
    %c0_i32_1 = arith.constant 0 : i32
    return %c0_i32, %c0_i32_0 : i32, i32
  }
  func.func @transform_9(%arg0: i32) -> (i32, i32) {
    %c0_i32 = arith.constant 0 : i32
    %c0_i32_0 = arith.constant 0 : i32
    %c0_i32_1 = arith.constant 0 : i32
    return %c0_i32, %c0_i32_0 : i32, i32
  }
  func.func @transform_10(%arg0: i32) -> (i32, i32) {
    %c0_i32 = arith.constant 0 : i32
    %c0_i32_0 = arith.constant 0 : i32
    %c0_i32_1 = arith.constant 0 : i32
    return %c0_i32, %c0_i32_0 : i32, i32
  }
  func.func @transform_11(%arg0: i32) -> (i32, i32) {
    %c0_i32 = arith.constant 0 : i32
    %c0_i32_0 = arith.constant 0 : i32
    return %arg0, %c0_i32 : i32, i32
  }
}

</mosaic_0001>

<llo_original>
// kernel: tpu_custom_call.1
$region0: #{tpu_custom_call.1}
  #allocation0 [shape = 'u32[]', space=smem, size = 0x4, offset = 0x4, fixed_abs, tag = 'smem constant byte address 0x4 - core index']
  #allocation1 [shape = 'u32[144,128]{1,0:T(1,128)}', space=vmem, size = 0x12000, scoped, tag = 'internal scratch']
  %s0 = inlined_call_operand.hbm [shape: f32[24,32], index: 0, kind: input, shape index: {}]
  %s1 = inlined_call_operand.hbm [shape: f32[32,640], index: 1, kind: input, shape index: {}]
  %s2 = inlined_call_operand.vmem [shape: f32[1,640], index: 2, kind: input, shape index: {}]
  %s3 = inlined_call_operand.hbm [shape: f32[256,256], index: 3, kind: input, shape index: {}]
  %s4 = inlined_call_operand.vmem [shape: f32[1,256], index: 4, kind: input, shape index: {}]
  %s5 = inlined_call_operand.hbm [shape: f32[256,128], index: 5, kind: input, shape index: {}]
  %s6 = inlined_call_operand.vmem [shape: f32[1,128], index: 6, kind: input, shape index: {}]
  %s7 = inlined_call_operand.hbm [shape: f32[128,128], index: 7, kind: input, shape index: {}]
  %s8 = inlined_call_operand.vmem [shape: f32[1,128], index: 8, kind: input, shape index: {}]
  %s9 = inlined_call_operand.hbm [shape: f32[128,128], index: 9, kind: input, shape index: {}]
  %s10 = inlined_call_operand.vmem [shape: f32[1,128], index: 10, kind: input, shape index: {}]
  %s11 = inlined_call_operand.hbm [shape: f32[24,128], index: 11, kind: output, shape index: {}]
  %s12 = sld [smem:[#allocation0]]
  $region101: #{tpu_custom_call.1} parent=0
    _
  %s14 = ssub.s32 1, %s12
  %s15 = scalar_select 0, %s14, %s12
  $region1: #{tpu_custom_call.1} parent=0
    #allocation2 [shape = 'u8[8192]{0}', space=vmem, size = 0x2000, scoped, tag = 'input window, operand 0']
    #allocation3 [shape = 's32[2]{0}', space=sflag, size = 0x8, scoped, tag = 'scoped memory for tpu_custom_call.1']
    #allocation4 [shape = 's32[2]{0}', space=sflag, size = 0x8, scoped, tag = 'scoped memory for tpu_custom_call.1']
    #allocation5 [shape = 'u8[81920]{0}', space=vmem, size = 0x14000, scoped, tag = 'input window, operand 1, single buffered']
    #allocation6 [shape = 's32[1]{0}', space=sflag, size = 0x4, scoped, tag = 'scoped memory for tpu_custom_call.1']
    #allocation7 [shape = 'u8[262144]{0}', space=vmem, size = 0x40000, scoped, tag = 'input window, operand 3, single buffered']
    #allocation8 [shape = 'u8[131072]{0}', space=vmem, size = 0x20000, scoped, tag = 'input window, operand 5, single buffered']
    #allocation9 [shape = 's32[1]{0}', space=sflag, size = 0x4, scoped, tag = 'scoped memory for tpu_custom_call.1']
    #allocation10 [shape = 'u8[65536]{0}', space=vmem, size = 0x10000, scoped, tag = 'input window, operand 7, single buffered']
    #allocation11 [shape = 'u8[65536]{0}', space=vmem, size = 0x10000, scoped, tag = 'input window, operand 9, single buffered']
    #allocation12 [shape = 's32[1]{0}', space=sflag, size = 0x4, scoped, tag = 'scoped memory for tpu_custom_call.1']
    #allocation13 [shape = 'u8[8192]{0}', space=vmem, size = 0x2000, scoped, tag = 'output window, operand 0']
    %16 = vsyncpa [#allocation3], 0
    %s17 = scalar_lea.sflag [#allocation3], 1
    %18 = vsyncpa %s17, 0
    %19 = vsyncpa [#allocation6], 0
    %20 = vsyncpa [#allocation9], 0
    %21 = vsyncpa [#allocation12], 0
    %22 = vsyncpa [#allocation4], 0
    %s23 = scalar_lea.sflag [#allocation4], 1
    %24 = vsyncpa %s23, 0
    loop: start=0, step=1, limit=5
    $region2: #{tpu_custom_call.1} parent=1 // loop_pre_header
      _
    $region3: #{tpu_custom_call.1} parent=1 // loop_header
      %s26 = sphi 0, %s30
      %p27 = scmp.ge.s32.totalorder %s26, 5
      %s36 = sphi 0, %s38
      %s39 = sphi 0, %s36
      %s40 = sphi 0, %s39
      %s56 = sphi 0, %s40
      %s60 = sphi 0, %s60
      %s62 = sphi 0, %s60
      %s63 = sphi 0, %s62
      %s77 = sphi 0, %s63
      %s81 = sphi 0, %s81
      %s83 = sphi 0, %s81
      %s84 = sphi 0, %s83
      %s98 = sphi 0, %s84
      %s102 = sphi 0, %s102
      %s104 = sphi 0, %s102
      %s105 = sphi 0, %s104
      %s119 = sphi 0, %s105
      %s123 = sphi 0, %s123
      %s125 = sphi 0, %s123
      %s126 = sphi 0, %s125
      %s140 = sphi 0, %s126
      %s144 = sphi 0, %s144
      %s146 = sphi 0, %s144
      %s147 = sphi 0, %s146
      %s161 = sphi 0, %s147
      %s165 = sphi 0, %s165
      %s167 = sphi 0, %s165
      %s168 = sphi 0, %s167
      %s182 = sphi 0, %s168
      %s186 = sphi 0, %s186
      %s188 = sphi 0, %s186
      %s189 = sphi 0, %s188
      %s203 = sphi 0, %s189
      %s207 = sphi 0, %s207
      %s209 = sphi 0, %s207
      %s210 = sphi 0, %s209
      %s224 = sphi 0, %s210
      %s228 = sphi 0, %s228
      %s230 = sphi 0, %s228
      %s231 = sphi 0, %s230
      %s245 = sphi 0, %s231
      %s249 = sphi 0, %s249
      %s251 = sphi 0, %s249
      %s252 = sphi 0, %s251
      %s266 = sphi 0, %s252
      %s272 = sphi 0, %s274
      %s275 = sphi 0, %s272
      %s276 = sphi 0, %s275
      %s292 = sphi 0, %s276
    $region4: #{tpu_custom_call.1} parent=1 // loop_header_branch
      %29 = sbr.rel (%p27) target = $region8
    $region5: #{tpu_custom_call.1} parent=1 // loop_body
      %s31 = ssub.s32 %s26, 1
      %s32 = ssub.s32 %s26, 2
      %s33 = sadd.s32 %s26, 1
      %s34 = ssub.s32 %s26, %s33
      %p35 = scmp.eq.s32.totalorder %s34, 0
      %s37 = sadd.s32 %s36, 1
      %s38 = scalar_select %p35, %s36, %s37
      %p41 = pneg %p35
      %p42 = scmp.eq.s32.totalorder %s26, 2
      %p43 = por %p41, %p42
      %p44 = scmp.ne.s32.totalorder %s36, %s39
      %p45 = scmp.eq.s32.totalorder %s26, 0
      %p46 = por %p44, %p45
      %p47 = scmp.ne.s32.totalorder %s36, %s39
      %p48 = scmp.eq.s32.totalorder %s31, 2
      %p49 = por %p47, %p48
      %p50 = scmp.ne.s32.totalorder %s39, %s40
      %p51 = scmp.eq.s32.totalorder %s31, 0
      %p52 = por %p50, %p51
      %p53 = scmp.ne.s32.totalorder %s39, %s40
      %p54 = scmp.eq.s32.totalorder %s32, 2
      %p55 = por %p53, %p54
      %p57 = scmp.ne.s32.totalorder %s40, %s56
      %p58 = scmp.eq.s32.totalorder %s32, 0
      %p59 = por %p57, %p58
      %s61 = sadd.s32 %s60, 1
      %p64 = scmp.eq.s32.totalorder %s26, 2
      %p65 = scmp.ne.s32.totalorder %s60, %s62
      %p66 = scmp.eq.s32.totalorder %s26, 0
      %p67 = por %p65, %p66
      %p68 = scmp.ne.s32.totalorder %s60, %s62
      %p69 = scmp.eq.s32.totalorder %s31, 2
      %p70 = por %p68, %p69
      %p71 = scmp.ne.s32.totalorder %s62, %s63
      %p72 = scmp.eq.s32.totalorder %s31, 0
      %p73 = por %p71, %p72
      %p74 = scmp.ne.s32.totalorder %s62, %s63
      %p75 = scmp.eq.s32.totalorder %s32, 2
      %p76 = por %p74, %p75
      %p78 = scmp.ne.s32.totalorder %s63, %s77
      %p79 = scmp.eq.s32.totalorder %s32, 0
      %p80 = por %p78, %p79
      %s82 = sadd.s32 %s81, 1
      %p85 = scmp.eq.s32.totalorder %s26, 2
      %p86 = scmp.ne.s32.totalorder %s81, %s83
      %p87 = scmp.eq.s32.totalorder %s26, 0
      %p88 = por %p86, %p87
      %p89 = scmp.ne.s32.totalorder %s81, %s83
      %p90 = scmp.eq.s32.totalorder %s31, 2
      %p91 = por %p89, %p90
      %p92 = scmp.ne.s32.totalorder %s83, %s84
      %p93 = scmp.eq.s32.totalorder %s31, 0
      %p94 = por %p92, %p93
      %p95 = scmp.ne.s32.totalorder %s83, %s84
      %p96 = scmp.eq.s32.totalorder %s32, 2
      %p97 = por %p95, %p96
      %p99 = scmp.ne.s32.totalorder %s84, %s98
      %p100 = scmp.eq.s32.totalorder %s32, 0
      %p101 = por %p99, %p100
      %s103 = sadd.s32 %s102, 1
      %p106 = scmp.eq.s32.totalorder %s26, 2
      %p107 = scmp.ne.s32.totalorder %s102, %s104
      %p108 = scmp.eq.s32.totalorder %s26, 0
      %p109 = por %p107, %p108
      %p110 = scmp.ne.s32.totalorder %s102, %s104
      %p111 = scmp.eq.s32.totalorder %s31, 2
      %p112 = por %p110, %p111
      %p113 = scmp.ne.s32.totalorder %s104, %s105
      %p114 = scmp.eq.s32.totalorder %s31, 0
      %p115 = por %p113, %p114
      %p116 = scmp.ne.s32.totalorder %s104, %s105
      %p117 = scmp.eq.s32.totalorder %s32, 2
      %p118 = por %p116, %p117
      %p120 = scmp.ne.s32.totalorder %s105, %s119
      %p121 = scmp.eq.s32.totalorder %s32, 0
      %p122 = por %p120, %p121
      %s124 = sadd.s32 %s123, 1
      %p127 = scmp.eq.s32.totalorder %s26, 2
      %p128 = scmp.ne.s32.totalorder %s123, %s125
      %p129 = scmp.eq.s32.totalorder %s26, 0
      %p130 = por %p128, %p129
      %p131 = scmp.ne.s32.totalorder %s123, %s125
      %p132 = scmp.eq.s32.totalorder %s31, 2
      %p133 = por %p131, %p132
      %p134 = scmp.ne.s32.totalorder %s125, %s126
      %p135 = scmp.eq.s32.totalorder %s31, 0
      %p136 = por %p134, %p135
      %p137 = scmp.ne.s32.totalorder %s125, %s126
      %p138 = scmp.eq.s32.totalorder %s32, 2
      %p139 = por %p137, %p138
      %p141 = scmp.ne.s32.totalorder %s126, %s140
      %p142 = scmp.eq.s32.totalorder %s32, 0
      %p143 = por %p141, %p142
      %s145 = sadd.s32 %s144, 1
      %p148 = scmp.eq.s32.totalorder %s26, 2
      %p149 = scmp.ne.s32.totalorder %s144, %s146
      %p150 = scmp.eq.s32.totalorder %s26, 0
      %p151 = por %p149, %p150
      %p152 = scmp.ne.s32.totalorder %s144, %s146
      %p153 = scmp.eq.s32.totalorder %s31, 2
      %p154 = por %p152, %p153
      %p155 = scmp.ne.s32.totalorder %s146, %s147
      %p156 = scmp.eq.s32.totalorder %s31, 0
      %p157 = por %p155, %p156
      %p158 = scmp.ne.s32.totalorder %s146, %s147
      %p159 = scmp.eq.s32.totalorder %s32, 2
      %p160 = por %p158, %p159
      %p162 = scmp.ne.s32.totalorder %s147, %s161
      %p163 = scmp.eq.s32.totalorder %s32, 0
      %p164 = por %p162, %p163
      %s166 = sadd.s32 %s165, 1
      %p169 = scmp.eq.s32.totalorder %s26, 2
      %p170 = scmp.ne.s32.totalorder %s165, %s167
      %p171 = scmp.eq.s32.totalorder %s26, 0
      %p172 = por %p170, %p171
      %p173 = scmp.ne.s32.totalorder %s165, %s167
      %p174 = scmp.eq.s32.totalorder %s31, 2
      %p175 = por %p173, %p174
      %p176 = scmp.ne.s32.totalorder %s167, %s168
      %p177 = scmp.eq.s32.totalorder %s31, 0
      %p178 = por %p176, %p177
      %p179 = scmp.ne.s32.totalorder %s167, %s168
      %p180 = scmp.eq.s32.totalorder %s32, 2
      %p181 = por %p179, %p180
      %p183 = scmp.ne.s32.totalorder %s168, %s182
      %p184 = scmp.eq.s32.totalorder %s32, 0
      %p185 = por %p183, %p184
      %s187 = sadd.s32 %s186, 1
      %p190 = scmp.eq.s32.totalorder %s26, 2
      %p191 = scmp.ne.s32.totalorder %s186, %s188
      %p192 = scmp.eq.s32.totalorder %s26, 0
      %p193 = por %p191, %p192
      %p194 = scmp.ne.s32.totalorder %s186, %s188
      %p195 = scmp.eq.s32.totalorder %s31, 2
      %p196 = por %p194, %p195
      %p197 = scmp.ne.s32.totalorder %s188, %s189
      %p198 = scmp.eq.s32.totalorder %s31, 0
      %p199 = por %p197, %p198
      %p200 = scmp.ne.s32.totalorder %s188, %s189
      %p201 = scmp.eq.s32.totalorder %s32, 2
      %p202 = por %p200, %p201
      %p204 = scmp.ne.s32.totalorder %s189, %s203
      %p205 = scmp.eq.s32.totalorder %s32, 0
      %p206 = por %p204, %p205
      %s208 = sadd.s32 %s207, 1
      %p211 = scmp.eq.s32.totalorder %s26, 2
      %p212 = scmp.ne.s32.totalorder %s207, %s209
      %p213 = scmp.eq.s32.totalorder %s26, 0
      %p214 = por %p212, %p213
      %p215 = scmp.ne.s32.totalorder %s207, %s209
      %p216 = scmp.eq.s32.totalorder %s31, 2
      %p217 = por %p215, %p216
      %p218 = scmp.ne.s32.totalorder %s209, %s210
      %p219 = scmp.eq.s32.totalorder %s31, 0
      %p220 = por %p218, %p219
      %p221 = scmp.ne.s32.totalorder %s209, %s210
      %p222 = scmp.eq.s32.totalorder %s32, 2
      %p223 = por %p221, %p222
      %p225 = scmp.ne.s32.totalorder %s210, %s224
      %p226 = scmp.eq.s32.totalorder %s32, 0
      %p227 = por %p225, %p226
      %s229 = sadd.s32 %s228, 1
      %p232 = scmp.eq.s32.totalorder %s26, 2
      %p233 = scmp.ne.s32.totalorder %s228, %s230
      %p234 = scmp.eq.s32.totalorder %s26, 0
      %p235 = por %p233, %p234
      %p236 = scmp.ne.s32.totalorder %s228, %s230
      %p237 = scmp.eq.s32.totalorder %s31, 2
      %p238 = por %p236, %p237
      %p239 = scmp.ne.s32.totalorder %s230, %s231
      %p240 = scmp.eq.s32.totalorder %s31, 0
      %p241 = por %p239, %p240
      %p242 = scmp.ne.s32.totalorder %s230, %s231
      %p243 = scmp.eq.s32.totalorder %s32, 2
      %p244 = por %p242, %p243
      %p246 = scmp.ne.s32.totalorder %s231, %s245
      %p247 = scmp.eq.s32.totalorder %s32, 0
      %p248 = por %p246, %p247
      %s250 = sadd.s32 %s249, 1
      %p253 = scmp.eq.s32.totalorder %s26, 2
      %p254 = scmp.ne.s32.totalorder %s249, %s251
      %p255 = scmp.eq.s32.totalorder %s26, 0
      %p256 = por %p254, %p255
      %p257 = scmp.ne.s32.totalorder %s249, %s251
      %p258 = scmp.eq.s32.totalorder %s31, 2
      %p259 = por %p257, %p258
      %p260 = scmp.ne.s32.totalorder %s251, %s252
      %p261 = scmp.eq.s32.totalorder %s31, 0
      %p262 = por %p260, %p261
      %p263 = scmp.ne.s32.totalorder %s251, %s252
      %p264 = scmp.eq.s32.totalorder %s32, 2
      %p265 = por %p263, %p264
      %p267 = scmp.ne.s32.totalorder %s252, %s266
      %p268 = scmp.eq.s32.totalorder %s32, 0
      %p269 = por %p267, %p268
      %s270 = ssub.s32 %s26, %s33
      %p271 = scmp.eq.s32.totalorder %s270, 0
      %s273 = sadd.s32 %s272, 1
      %s274 = scalar_select %p271, %s272, %s273
      %p277 = pneg %p271
      %p278 = scmp.eq.s32.totalorder %s26, 2
      %p279 = por %p277, %p278
      %p280 = scmp.ne.s32.totalorder %s272, %s275
      %p281 = scmp.eq.s32.totalorder %s26, 0
      %p282 = por %p280, %p281
      %p283 = scmp.ne.s32.totalorder %s272, %s275
      %p284 = scmp.eq.s32.totalorder %s31, 2
      %p285 = por %p283, %p284
      %p286 = scmp.ne.s32.totalorder %s275, %s276
      %p287 = scmp.eq.s32.totalorder %s31, 0
      %p288 = por %p286, %p287
      %p289 = scmp.ne.s32.totalorder %s275, %s276
      %p290 = scmp.eq.s32.totalorder %s32, 2
      %p291 = por %p289, %p290
      %p293 = scmp.ne.s32.totalorder %s276, %s292
      %p294 = scmp.eq.s32.totalorder %s32, 0
      %p295 = por %p293, %p294
      %p296 = scmp.le.s32.totalorder 1, %s26
      %p297 = scmp.lt.s32.totalorder %s26, 4
      %p298 = pnand %p296, %p297
      %p299 = pneg %p298
      // Predicated region
      $region9: #{tpu_custom_call.1} parent=5 // pred_check
        _
      $region10: #{tpu_custom_call.1} parent=5 // pred_check_branch
        %301 = sbr.rel (%p298) target = $region12
      $region11: #{tpu_custom_call.1} parent=5 // pred_region
        %s302 = ssub.s32 %s26, 1
        // Predicated region
        $region13: #{tpu_custom_call.1} parent=11 // pred_check
          %p303 = pneg %p73
        $region14: #{tpu_custom_call.1} parent=11 // pred_check_branch
          %305 = sbr.rel (%p303) target = $region16
        $region15: #{tpu_custom_call.1} parent=11 // pred_region
          %s307 = ssub.s32 2560, 2560
          %308 = vsyncadd [#allocation6], %s307
          %s309 = sshll.u32 [#allocation5], 4
          %s310 = int_to_ptr.vmem [resolvable:$true] %s309
          %315 = dma.hbm_to_vmem [thread:$0]  %s1, 2560, %s310, [#allocation6], 640, 640, 40
        $region16: #{tpu_custom_call.1} parent=11 // pred_fallthru
          _
        // Predicated region
        $region17: #{tpu_custom_call.1} parent=11 // pred_check
          %p316 = pneg %p94
        $region18: #{tpu_custom_call.1} parent=11 // pred_check_branch
          %318 = sbr.rel (%p316) target = $region20
        $region19: #{tpu_custom_call.1} parent=11 // pred_region
          _
        $region20: #{tpu_custom_call.1} parent=11 // pred_fallthru
          _
        // Predicated region
        $region21: #{tpu_custom_call.1} parent=11 // pred_check
          %p319 = pneg %p115
        $region22: #{tpu_custom_call.1} parent=11 // pred_check_branch
          %321 = sbr.rel (%p319) target = $region24
        $region23: #{tpu_custom_call.1} parent=11 // pred_region
          %s323 = ssub.s32 8192, 8192
          %324 = vsyncadd [#allocation6], %s323
          %s325 = sshll.u32 [#allocation7], 4
          %s326 = int_to_ptr.vmem [resolvable:$true] %s325
          %331 = dma.hbm_to_vmem [thread:$0]  %s3, 8192, %s326, [#allocation6], 256, 256, 16
        $region24: #{tpu_custom_call.1} parent=11 // pred_fallthru
          _
        // Predicated region
        $region25: #{tpu_custom_call.1} parent=11 // pred_check
          %p332 = pneg %p136
        $region26: #{tpu_custom_call.1} parent=11 // pred_check_branch
          %334 = sbr.rel (%p332) target = $region28
        $region27: #{tpu_custom_call.1} parent=11 // pred_region
          _
        $region28: #{tpu_custom_call.1} parent=11 // pred_fallthru
          _
        // Predicated region
        $region29: #{tpu_custom_call.1} parent=11 // pred_check
          %p335 = pneg %p157
        $region30: #{tpu_custom_call.1} parent=11 // pred_check_branch
          %337 = sbr.rel (%p335) target = $region32
        $region31: #{tpu_custom_call.1} parent=11 // pred_region
          %s339 = ssub.s32 4096, 4096
          %340 = vsyncadd [#allocation9], %s339
          %s341 = sshll.u32 [#allocation8], 4
          %s342 = int_to_ptr.vmem [resolvable:$true] %s341
          %347 = dma.hbm_to_vmem [thread:$0]  %s5, 4096, %s342, [#allocation9], 128, 128, 8
        $region32: #{tpu_custom_call.1} parent=11 // pred_fallthru
          _
        // Predicated region
        $region33: #{tpu_custom_call.1} parent=11 // pred_check
          %p348 = pneg %p178
        $region34: #{tpu_custom_call.1} parent=11 // pred_check_branch
          %350 = sbr.rel (%p348) target = $region36
        $region35: #{tpu_custom_call.1} parent=11 // pred_region
          _
        $region36: #{tpu_custom_call.1} parent=11 // pred_fallthru
          _
        // Predicated region
        $region37: #{tpu_custom_call.1} parent=11 // pred_check
          %p351 = pneg %p199
        $region38: #{tpu_custom_call.1} parent=11 // pred_check_branch
          %353 = sbr.rel (%p351) target = $region40
        $region39: #{tpu_custom_call.1} parent=11 // pred_region
          %s355 = ssub.s32 2048, 2048
          %356 = vsyncadd [#allocation9], %s355
          %s357 = sshll.u32 [#allocation10], 4
          %s358 = int_to_ptr.vmem [resolvable:$true] %s357
          %363 = dma.hbm_to_vmem [thread:$0]  %s7, 2048, %s358, [#allocation9], 128, 128, 8
        $region40: #{tpu_custom_call.1} parent=11 // pred_fallthru
          _
        // Predicated region
        $region41: #{tpu_custom_call.1} parent=11 // pred_check
          %p364 = pneg %p220
        $region42: #{tpu_custom_call.1} parent=11 // pred_check_branch
          %366 = sbr.rel (%p364) target = $region44
        $region43: #{tpu_custom_call.1} parent=11 // pred_region
          _
        $region44: #{tpu_custom_call.1} parent=11 // pred_fallthru
          _
        // Predicated region
        $region45: #{tpu_custom_call.1} parent=11 // pred_check
          %p367 = pneg %p241
        $region46: #{tpu_custom_call.1} parent=11 // pred_check_branch
          %369 = sbr.rel (%p367) target = $region48
        $region47: #{tpu_custom_call.1} parent=11 // pred_region
          %s371 = ssub.s32 2048, 2048
          %372 = vsyncadd [#allocation12], %s371
          %s373 = sshll.u32 [#allocation11], 4
          %s374 = int_to_ptr.vmem [resolvable:$true] %s373
          %379 = dma.hbm_to_vmem [thread:$0]  %s9, 2048, %s374, [#allocation12], 128, 128, 8
        $region48: #{tpu_custom_call.1} parent=11 // pred_fallthru
          _
        // Predicated region
        $region49: #{tpu_custom_call.1} parent=11 // pred_check
          %p380 = pneg %p262
        $region50: #{tpu_custom_call.1} parent=11 // pred_check_branch
          %382 = sbr.rel (%p380) target = $region52
        $region51: #{tpu_custom_call.1} parent=11 // pred_region
          _
        $region52: #{tpu_custom_call.1} parent=11 // pred_fallthru
          _
      $region12: #{tpu_custom_call.1} parent=5 // pred_fallthru
        _
      %p383 = scmp.lt.s32.totalorder %s26, 3
      // Predicated region
      $region53: #{tpu_custom_call.1} parent=5 // pred_check
        %p384 = pneg %p383
      $region54: #{tpu_custom_call.1} parent=5 // pred_check_branch
        %386 = sbr.rel (%p384) target = $region56
      $region55: #{tpu_custom_call.1} parent=5 // pred_region
        // Predicated region
        $region57: #{tpu_custom_call.1} parent=55 // pred_check
          %p387 = pneg %p46
        $region58: #{tpu_custom_call.1} parent=55 // pred_check_branch
          %389 = sbr.rel (%p387) target = $region60
        $region59: #{tpu_custom_call.1} parent=55 // pred_region
          %s390 = sand.u32 %s36, 1
          %s391 = scalar_lea.sflag [#allocation3], %s390
          %s392 = sand.u32 %s36, 1
          %s393 = smul.addr %s392, 8
          %s394 = scalar_lea.vmem [#allocation2], %s393
          %s396 = ssub.s32 128, 128
          %397 = vsyncadd %s391, %s396
          %s398 = smul.addr %s26, 128
          %s399 = scalar_lea.hbm %s0, %s398
          %s401 = sshll.u32 %s394, 4
          %s402 = int_to_ptr.vmem [resolvable:$true] %s401
          %404 = dma.hbm_to_vmem [thread:$0]  %s399, 128, %s402, %s391
        $region60: #{tpu_custom_call.1} parent=55 // pred_fallthru
          _
      $region56: #{tpu_custom_call.1} parent=5 // pred_fallthru
        _
      %p405 = scmp.le.s32.totalorder 1, %s26
      %p406 = scmp.lt.s32.totalorder %s26, 4
      %p407 = pnand %p405, %p406
      %p408 = pneg %p407
      // Predicated region
      $region61: #{tpu_custom_call.1} parent=5 // pred_check
        _
      $region62: #{tpu_custom_call.1} parent=5 // pred_check_branch
        %410 = sbr.rel (%p407) target = $region64
      $region63: #{tpu_custom_call.1} parent=5 // pred_region
        %s411 = ssub.s32 %s26, 1
        %s412 = sand.u32 %s39, 1
        %s413 = scalar_lea.sflag [#allocation3], %s412
        %s414 = sand.u32 %s39, 1
        %s415 = smul.addr %s414, 8
        %s416 = scalar_lea.vmem [#allocation2], %s415
        // Predicated region
        $region65: #{tpu_custom_call.1} parent=63 // pred_check
          %p417 = pneg %p52
        $region66: #{tpu_custom_call.1} parent=63 // pred_check_branch
          %419 = sbr.rel (%p417) target = $region68
        $region67: #{tpu_custom_call.1} parent=63 // pred_region
          %420 = dma.done %s413, 128
        $region68: #{tpu_custom_call.1} parent=63 // pred_fallthru
          _
        // Predicated region
        $region69: #{tpu_custom_call.1} parent=63 // pred_check
          %p421 = pneg %p73
        $region70: #{tpu_custom_call.1} parent=63 // pred_check_branch
          %423 = sbr.rel (%p421) target = $region72
        $region71: #{tpu_custom_call.1} parent=63 // pred_region
          %424 = dma.done [#allocation6], 2560
        $region72: #{tpu_custom_call.1} parent=63 // pred_fallthru
          _
        // Predicated region
        $region73: #{tpu_custom_call.1} parent=63 // pred_check
          %p425 = pneg %p115
        $region74: #{tpu_custom_call.1} parent=63 // pred_check_branch
          %427 = sbr.rel (%p425) target = $region76
        $region75: #{tpu_custom_call.1} parent=63 // pred_region
          %428 = dma.done [#allocation6], 8192
        $region76: #{tpu_custom_call.1} parent=63 // pred_fallthru
          _
        // Predicated region
        $region77: #{tpu_custom_call.1} parent=63 // pred_check
          %p429 = pneg %p157
        $region78: #{tpu_custom_call.1} parent=63 // pred_check_branch
          %431 = sbr.rel (%p429) target = $region80
        $region79: #{tpu_custom_call.1} parent=63 // pred_region
          %432 = dma.done [#allocation9], 4096
        $region80: #{tpu_custom_call.1} parent=63 // pred_fallthru
          _
        // Predicated region
        $region81: #{tpu_custom_call.1} parent=63 // pred_check
          %p433 = pneg %p199
        $region82: #{tpu_custom_call.1} parent=63 // pred_check_branch
          %435 = sbr.rel (%p433) target = $region84
        $region83: #{tpu_custom_call.1} parent=63 // pred_region
          %436 = dma.done [#allocation9], 2048
        $region84: #{tpu_custom_call.1} parent=63 // pred_fallthru
          _
        // Predicated region
        $region85: #{tpu_custom_call.1} parent=63 // pred_check
          %p437 = pneg %p241
        $region86: #{tpu_custom_call.1} parent=63 // pred_check_branch
          %439 = sbr.rel (%p437) target = $region88
        $region87: #{tpu_custom_call.1} parent=63 // pred_region
          %440 = dma.done [#allocation12], 2048
        $region88: #{tpu_custom_call.1} parent=63 // pred_fallthru
          _
        %s441 = sand.u32 %s39, 1
        %s442 = scalar_lea.sflag [#allocation3], %s441
        %s443 = sand.u32 %s39, 1
        %s444 = smul.addr %s443, 8
        %s445 = scalar_lea.vmem [#allocation2], %s444
        %p446 = pneg %p52
        %p447 = pneg %p49
        %p448 = pneg %p73
        %p449 = pneg %p70
        %p450 = pneg %p94
        %p451 = pneg %p91
        %p452 = pneg %p115
        %p453 = pneg %p112
        %p454 = pneg %p136
        %p455 = pneg %p133
        %p456 = pneg %p157
        %p457 = pneg %p154
        %p458 = pneg %p178
        %p459 = pneg %p175
        %p460 = pneg %p199
        %p461 = pneg %p196
        %p462 = pneg %p220
        %p463 = pneg %p217
        %p464 = pneg %p241
        %p465 = pneg %p238
        %p466 = pneg %p262
        %p467 = pneg %p259
        %p468 = pneg %p288
        %p469 = pneg %p285
        %s470 = sand.u32 %s275, 1
        %s471 = scalar_lea.sflag [#allocation4], %s470
        %s472 = sand.u32 %s275, 1
        %s473 = smul.addr %s472, 8
        %s474 = scalar_lea.vmem [#allocation13], %s473
        %v475 = vld [vmem:[%s416] sm:$0xff]
        %v476 = vld [vmem:[#allocation5] sm:$0xff]
        %v477 = vld [vmem:[#allocation5 + $0x8] sm:$0xff]
        %v478 = vld [vmem:[#allocation5 + $0x10] sm:$0xff]
        %v479 = vld [vmem:[#allocation5 + $0x18] sm:$0xff]
        %v480 = vld [vmem:[#allocation5 + $0x20] sm:$0xff]
        %v481 = vld [vmem:[#allocation5 + $0x28] sm:$0xff]
        %v482 = vld [vmem:[#allocation5 + $0x30] sm:$0xff]
        %v483 = vld [vmem:[#allocation5 + $0x38] sm:$0xff]
        %v484 = vld [vmem:[#allocation5 + $0x40] sm:$0xff]
        %v485 = vld [vmem:[#allocation5 + $0x48] sm:$0xff]
        %v486 = vld [vmem:[#allocation5 + $0x50] sm:$0xff]
        %v487 = vld [vmem:[#allocation5 + $0x58] sm:$0xff]
        %v488 = vld [vmem:[#allocation5 + $0x60] sm:$0xff]
        %v489 = vld [vmem:[#allocation5 + $0x68] sm:$0xff]
        %v490 = vld [vmem:[#allocation5 + $0x70] sm:$0xff]
        %v491 = vld [vmem:[#allocation5 + $0x78] sm:$0xff]
        %v492 = vld [vmem:[#allocation5 + $0x80] sm:$0xff]
        %v493 = vld [vmem:[#allocation5 + $0x88] sm:$0xff]
        %v494 = vld [vmem:[#allocation5 + $0x90] sm:$0xff]
        %v495 = vld [vmem:[#allocation5 + $0x98] sm:$0xff]
        %v496 = vld [vmem:[%s2] sm:$0x1f]
        %v498 = vlaneseq
        %v499 = vshrl.u32 %v498, 7
        %v500 = vsub.s32 0, %v499
        %v501 = vrot.slane %v496, %v500
        %v502 = vlaneseq
        %v503 = vshrl.u32 %v502, 7
        %v504 = vsub.s32 1, %v503
        %v505 = vrot.slane %v496, %v504
        %v506 = vlaneseq
        %v507 = vshrl.u32 %v506, 7
        %v508 = vsub.s32 2, %v507
        %v509 = vrot.slane %v496, %v508
        %v510 = vlaneseq
        %v511 = vshrl.u32 %v510, 7
        %v512 = vsub.s32 3, %v511
        %v513 = vrot.slane %v496, %v512
        %v514 = vlaneseq
        %v515 = vshrl.u32 %v514, 7
        %v516 = vsub.s32 4, %v515
        %v517 = vrot.slane %v496, %v516
        %vm523 = vcmask 261120
        %v525 = vsel %vm523, %v475, 0
        %527 = vmatprep.subr.mxu0 %v477
        %528 = vmatpush1.msra.mxu0 %v476
        %529 = vmatprep.subr.mxu0 %v482
        %530 = vmatpush1.msra.mxu0 %v481
        %531 = vmatprep.subr.mxu0 %v487
        %532 = vmatpush1.msra.mxu0 %v486
        %533 = vmatprep.subr.mxu0 %v492
        %534 = vmatpush1.msra.mxu0 %v491
        %535 = vmatprep.subr.mxu0 0.0
        %536 = vmatpush1.msra.mxu0 0.0
        %537 = vmatprep.subr.mxu0 0.0
        %538 = vmatpush1.msra.mxu0 0.0
        %539 = vmatprep.subr.mxu0 0.0
        %540 = vmatpush1.msra.mxu0 0.0
        %541 = vmatprep.subr.mxu0 0.0
        %542 = vmatpush1.msra.mxu0 0.0
        %543 = vmatprep.subr.mxu0 0.0
        %544 = vmatpush1.msra.mxu0 0.0
        %545 = vmatprep.subr.mxu0 0.0
        %546 = vmatpush1.msra.mxu0 0.0
        %547 = vmatprep.subr.mxu0 0.0
        %548 = vmatpush1.msra.mxu0 0.0
        %549 = vmatprep.subr.mxu0 0.0
        %550 = vmatpush1.msra.mxu0 0.0
        %551 = vmatprep.subr.mxu0 0.0
        %552 = vmatpush1.msra.mxu0 0.0
        %553 = vmatprep.subr.mxu0 0.0
        %554 = vmatpush1.msra.mxu0 0.0
        %555 = vmatprep.subr.mxu0 0.0
        %556 = vmatpush1.msra.mxu0 0.0
        %557 = vmatprep.subr.mxu0 0.0
        %558 = vmatpush1.msra.mxu0 0.0
        %559 = vmatprep.subr.mxu0 0.0
        %560 = vmatpush1.msra.mxu0 0.0
        %561 = vmatprep.subr.mxu0 0.0
        %562 = vmatpush1.msra.mxu0 0.0
        %563 = vmatprep.subr.mxu0 0.0
        %564 = vmatpush1.msra.mxu0 0.0
        %565 = vmatprep.subr.mxu0 0.0
        %566 = vmatpush1.msra.mxu0 0.0
        %567 = vmatprep.subr.mxu0 0.0
        %568 = vmatpush1.msra.mxu0 0.0
        %569 = vmatprep.subr.mxu0 0.0
        %570 = vmatpush1.msra.mxu0 0.0
        %571 = vmatprep.subr.mxu0 0.0
        %572 = vmatpush1.msra.mxu0 0.0
        %573 = vmatprep.subr.mxu0 0.0
        %574 = vmatpush1.msra.mxu0 0.0
        %575 = vmatprep.subr.mxu0 0.0
        %576 = vmatpush1.msra.mxu0 0.0
        %577 = vmatprep.subr.mxu0 0.0
        %578 = vmatpush1.msra.mxu0 0.0
        %579 = vmatprep.subr.mxu0 0.0
        %580 = vmatpush1.msra.mxu0 0.0
        %581 = vmatprep.subr.mxu0 0.0
        %582 = vmatpush1.msra.mxu0 0.0
        %583 = vmatprep.subr.mxu0 0.0
        %584 = vmatpush1.msra.mxu0 0.0
        %585 = vmatprep.subr.mxu0 0.0
        %586 = vmatpush1.msra.mxu0 0.0
        %587 = vmatprep.subr.mxu0 0.0
        %588 = vmatpush1.msra.mxu0 0.0
        %589 = vmatprep.subr.mxu0 0.0
        %590 = vmatpush1.msra.mxu0 0.0
        %591 = vmatprep.mubr.f32.mxu0 0.0
        %592 = vmatmul.mubr.f32.gmra.mrb[0].mxu0 %v525
        %v593 = vpop.f32.mrb[0].mxu0
        %v594 = vadd.f32 %v501, %v593
        %v595 = vpop.f32.mrb[0].mxu0
        %v596 = vadd.f32 %v505, %v595
        %597 = vdwg.mxu0
        %598 = vmatprep.subr.mxu0 %v479
        %599 = vmatpush1.msra.mxu0 %v478
        %600 = vmatprep.subr.mxu0 %v484
        %601 = vmatpush1.msra.mxu0 %v483
        %602 = vmatprep.subr.mxu0 %v489
        %603 = vmatpush1.msra.mxu0 %v488
        %604 = vmatprep.subr.mxu0 %v494
        %605 = vmatpush1.msra.mxu0 %v493
        %606 = vmatprep.subr.mxu0 0.0
        %607 = vmatpush1.msra.mxu0 0.0
        %608 = vmatprep.subr.mxu0 0.0
        %609 = vmatpush1.msra.mxu0 0.0
        %610 = vmatprep.subr.mxu0 0.0
        %611 = vmatpush1.msra.mxu0 0.0
        %612 = vmatprep.subr.mxu0 0.0
        %613 = vmatpush1.msra.mxu0 0.0
        %614 = vmatprep.subr.mxu0 0.0
        %615 = vmatpush1.msra.mxu0 0.0
        %616 = vmatprep.subr.mxu0 0.0
        %617 = vmatpush1.msra.mxu0 0.0
        %618 = vmatprep.subr.mxu0 0.0
        %619 = vmatpush1.msra.mxu0 0.0
        %620 = vmatprep.subr.mxu0 0.0
        %621 = vmatpush1.msra.mxu0 0.0
        %622 = vmatprep.subr.mxu0 0.0
        %623 = vmatpush1.msra.mxu0 0.0
        %624 = vmatprep.subr.mxu0 0.0
        %625 = vmatpush1.msra.mxu0 0.0
        %626 = vmatprep.subr.mxu0 0.0
        %627 = vmatpush1.msra.mxu0 0.0
        %628 = vmatprep.subr.mxu0 0.0
        %629 = vmatpush1.msra.mxu0 0.0
        %630 = vmatprep.subr.mxu0 0.0
        %631 = vmatpush1.msra.mxu0 0.0
        %632 = vmatprep.subr.mxu0 0.0
        %633 = vmatpush1.msra.mxu0 0.0
        %634 = vmatprep.subr.mxu0 0.0
        %635 = vmatpush1.msra.mxu0 0.0
        %636 = vmatprep.subr.mxu0 0.0
        %637 = vmatpush1.msra.mxu0 0.0
        %638 = vmatprep.subr.mxu0 0.0
        %639 = vmatpush1.msra.mxu0 0.0
        %640 = vmatprep.subr.mxu0 0.0
        %641 = vmatpush1.msra.mxu0 0.0
        %642 = vmatprep.subr.mxu0 0.0
        %643 = vmatpush1.msra.mxu0 0.0
        %644 = vmatprep.subr.mxu0 0.0
        %645 = vmatpush1.msra.mxu0 0.0
        %646 = vmatprep.subr.mxu0 0.0
        %647 = vmatpush1.msra.mxu0 0.0
        %648 = vmatprep.subr.mxu0 0.0
        %649 = vmatpush1.msra.mxu0 0.0
        %650 = vmatprep.subr.mxu0 0.0
        %651 = vmatpush1.msra.mxu0 0.0
        %652 = vmatprep.subr.mxu0 0.0
        %653 = vmatpush1.msra.mxu0 0.0
        %654 = vmatprep.subr.mxu0 0.0
        %655 = vmatpush1.msra.mxu0 0.0
        %656 = vmatprep.subr.mxu0 0.0
        %657 = vmatpush1.msra.mxu0 0.0
        %658 = vmatprep.subr.mxu0 0.0
        %659 = vmatpush1.msra.mxu0 0.0
        %660 = vmatprep.subr.mxu0 0.0
        %661 = vmatpush1.msra.mxu0 0.0
        %662 = vmatprep.mubr.f32.mxu0 0.0
        %663 = vmatmul.mubr.f32.gmra.mrb[0].mxu0 %v525
        %v664 = vpop.f32.mrb[0].mxu0
        %v665 = vadd.f32 %v509, %v664
        %v666 = vpop.f32.mrb[0].mxu0
        %v667 = vadd.f32 %v513, %v666
        %668 = vdwg.mxu0
        %669 = vmatprep.subr.mxu0 0.0
        %670 = vmatpush1.msra.mxu0 %v480
        %671 = vmatprep.subr.mxu0 0.0
        %672 = vmatpush1.msra.mxu0 %v485
        %673 = vmatprep.subr.mxu0 0.0
        %674 = vmatpush1.msra.mxu0 %v490
        %675 = vmatprep.subr.mxu0 0.0
        %676 = vmatpush1.msra.mxu0 %v495
        %677 = vmatprep.subr.mxu0 0.0
        %678 = vmatpush1.msra.mxu0 0.0
        %679 = vmatprep.subr.mxu0 0.0
        %680 = vmatpush1.msra.mxu0 0.0
        %681 = vmatprep.subr.mxu0 0.0
        %682 = vmatpush1.msra.mxu0 0.0
        %683 = vmatprep.subr.mxu0 0.0
        %684 = vmatpush1.msra.mxu0 0.0
        %685 = vmatprep.subr.mxu0 0.0
        %686 = vmatpush1.msra.mxu0 0.0
        %687 = vmatprep.subr.mxu0 0.0
        %688 = vmatpush1.msra.mxu0 0.0
        %689 = vmatprep.subr.mxu0 0.0
        %690 = vmatpush1.msra.mxu0 0.0
        %691 = vmatprep.subr.mxu0 0.0
        %692 = vmatpush1.msra.mxu0 0.0
        %693 = vmatprep.subr.mxu0 0.0
        %694 = vmatpush1.msra.mxu0 0.0
        %695 = vmatprep.subr.mxu0 0.0
        %696 = vmatpush1.msra.mxu0 0.0
        %697 = vmatprep.subr.mxu0 0.0
        %698 = vmatpush1.msra.mxu0 0.0
        %699 = vmatprep.subr.mxu0 0.0
        %700 = vmatpush1.msra.mxu0 0.0
        %701 = vmatprep.subr.mxu0 0.0
        %702 = vmatpush1.msra.mxu0 0.0
        %703 = vmatprep.subr.mxu0 0.0
        %704 = vmatpush1.msra.mxu0 0.0
        %705 = vmatprep.subr.mxu0 0.0
        %706 = vmatpush1.msra.mxu0 0.0
        %707 = vmatprep.subr.mxu0 0.0
        %708 = vmatpush1.msra.mxu0 0.0
        %709 = vmatprep.subr.mxu0 0.0
        %710 = vmatpush1.msra.mxu0 0.0
        %711 = vmatprep.subr.mxu0 0.0
        %712 = vmatpush1.msra.mxu0 0.0
        %713 = vmatprep.subr.mxu0 0.0
        %714 = vmatpush1.msra.mxu0 0.0
        %715 = vmatprep.subr.mxu0 0.0
        %716 = vmatpush1.msra.mxu0 0.0
        %717 = vmatprep.subr.mxu0 0.0
        %718 = vmatpush1.msra.mxu0 0.0
        %719 = vmatprep.subr.mxu0 0.0
        %720 = vmatpush1.msra.mxu0 0.0
        %721 = vmatprep.subr.mxu0 0.0
        %722 = vmatpush1.msra.mxu0 0.0
        %723 = vmatprep.subr.mxu0 0.0
        %724 = vmatpush1.msra.mxu0 0.0
        %725 = vmatprep.subr.mxu0 0.0
        %726 = vmatpush1.msra.mxu0 0.0
        %727 = vmatprep.subr.mxu0 0.0
        %728 = vmatpush1.msra.mxu0 0.0
        %729 = vmatprep.subr.mxu0 0.0
        %730 = vmatpush1.msra.mxu0 0.0
        %731 = vmatprep.subr.mxu0 0.0
        %732 = vmatpush1.msra.mxu0 0.0
        %733 = vmatprep.mubr.f32.mxu0 0.0
        %734 = vmatmul.mubr.f32.gmra.mrb[0].mxu0 %v525
        %v735 = vpop.f32.mrb[0].mxu0
        %v736 = vadd.f32 %v517, %v735
        %v737 = vpop.f32.mrb[0].mxu0
        %738 = vdwg.mxu0
        %v739 = vmax.f32 %v594, 0.0
        %v740 = vmax.f32 %v596, 0.0
        %v741 = vmax.f32 %v665, 0.0
        %v742 = vmax.f32 %v667, 0.0
        %v743 = vld [vmem:[#allocation7] sm:$0xff]
        %v744 = vld [vmem:[#allocation7 + $0x8] sm:$0xff]
        %v745 = vld [vmem:[#allocation7 + $0x10] sm:$0xff]
        %v746 = vld [vmem:[#allocation7 + $0x18] sm:$0xff]
        %v747 = vld [vmem:[#allocation7 + $0x20] sm:$0xff]
        %v748 = vld [vmem:[#allocation7 + $0x28] sm:$0xff]
        %v749 = vld [vmem:[#allocation7 + $0x30] sm:$0xff]
        %v750 = vld [vmem:[#allocation7 + $0x38] sm:$0xff]
        %v751 = vld [vmem:[#allocation7 + $0x40] sm:$0xff]
        %v752 = vld [vmem:[#allocation7 + $0x48] sm:$0xff]
        %v753 = vld [vmem:[#allocation7 + $0x50] sm:$0xff]
        %v754 = vld [vmem:[#allocation7 + $0x58] sm:$0xff]
        %v755 = vld [vmem:[#allocation7 + $0x60] sm:$0xff]
        %v756 = vld [vmem:[#allocation7 + $0x68] sm:$0xff]
        %v757 = vld [vmem:[#allocation7 + $0x70] sm:$0xff]
        %v758 = vld [vmem:[#allocation7 + $0x78] sm:$0xff]
        %v759 = vld [vmem:[#allocation7 + $0x80] sm:$0xff]
        %v760 = vld [vmem:[#allocation7 + $0x88] sm:$0xff]
        %v761 = vld [vmem:[#allocation7 + $0x90] sm:$0xff]
        %v762 = vld [vmem:[#allocation7 + $0x98] sm:$0xff]
        %v763 = vld [vmem:[#allocation7 + $0xa0] sm:$0xff]
        %v764 = vld [vmem:[#allocation7 + $0xa8] sm:$0xff]
        %v765 = vld [vmem:[#allocation7 + $0xb0] sm:$0xff]
        %v766 = vld [vmem:[#allocation7 + $0xb8] sm:$0xff]
        %v767 = vld [vmem:[#allocation7 + $0xc0] sm:$0xff]
        %v768 = vld [vmem:[#allocation7 + $0xc8] sm:$0xff]
        %v769 = vld [vmem:[#allocation7 + $0xd0] sm:$0xff]
        %v770 = vld [vmem:[#allocation7 + $0xd8] sm:$0xff]
        %v771 = vld [vmem:[#allocation7 + $0xe0] sm:$0xff]
        %v772 = vld [vmem:[#allocation7 + $0xe8] sm:$0xff]
        %v773 = vld [vmem:[#allocation7 + $0xf0] sm:$0xff]
        %v774 = vld [vmem:[#allocation7 + $0xf8] sm:$0xff]
        %v775 = vld [vmem:[#allocation7 + $0x100] sm:$0xff]
        %v776 = vld [vmem:[#allocation7 + $0x108] sm:$0xff]
        %v777 = vld [vmem:[#allocation7 + $0x110] sm:$0xff]
        %v778 = vld [vmem:[#allocation7 + $0x118] sm:$0xff]
        %v779 = vld [vmem:[#allocation7 + $0x120] sm:$0xff]
        %v780 = vld [vmem:[#allocation7 + $0x128] sm:$0xff]
        %v781 = vld [vmem:[#allocation7 + $0x130] sm:$0xff]
        %v782 = vld [vmem:[#allocation7 + $0x138] sm:$0xff]
        %v783 = vld [vmem:[#allocation7 + $0x140] sm:$0xff]
        %v784 = vld [vmem:[#allocation7 + $0x148] sm:$0xff]
        %v785 = vld [vmem:[#allocation7 + $0x150] sm:$0xff]
        %v786 = vld [vmem:[#allocation7 + $0x158] sm:$0xff]
        %v787 = vld [vmem:[#allocation7 + $0x160] sm:$0xff]
        %v788 = vld [vmem:[#allocation7 + $0x168] sm:$0xff]
        %v789 = vld [vmem:[#allocation7 + $0x170] sm:$0xff]
        %v790 = vld [vmem:[#allocation7 + $0x178] sm:$0xff]
        %v791 = vld [vmem:[#allocation7 + $0x180] sm:$0xff]
        %v792 = vld [vmem:[#allocation7 + $0x188] sm:$0xff]
        %v793 = vld [vmem:[#allocation7 + $0x190] sm:$0xff]
        %v794 = vld [vmem:[#allocation7 + $0x198] sm:$0xff]
        %v795 = vld [vmem:[#allocation7 + $0x1a0] sm:$0xff]
        %v796 = vld [vmem:[#allocation7 + $0x1a8] sm:$0xff]
        %v797 = vld [vmem:[#allocation7 + $0x1b0] sm:$0xff]
        %v798 = vld [vmem:[#allocation7 + $0x1b8] sm:$0xff]
        %v799 = vld [vmem:[#allocation7 + $0x1c0] sm:$0xff]
        %v800 = vld [vmem:[#allocation7 + $0x1c8] sm:$0xff]
        %v801 = vld [vmem:[#allocation7 + $0x1d0] sm:$0xff]
        %v802 = vld [vmem:[#allocation7 + $0x1d8] sm:$0xff]
        %v803 = vld [vmem:[#allocation7 + $0x1e0] sm:$0xff]
        %v804 = vld [vmem:[#allocation7 + $0x1e8] sm:$0xff]
        %v805 = vld [vmem:[#allocation7 + $0x1f0] sm:$0xff]
        %v806 = vld [vmem:[#allocation7 + $0x1f8] sm:$0xff]
        %v807 = vld [vmem:[%s4] sm:$0x3]
        %v809 = vlaneseq
        %v810 = vshrl.u32 %v809, 7
        %v811 = vsub.s32 0, %v810
        %v812 = vrot.slane %v807, %v811
        %v813 = vlaneseq
        %v814 = vshrl.u32 %v813, 7
        %v815 = vsub.s32 1, %v814
        %v816 = vrot.slane %v807, %v815
        %819 = vmatprep.subr.mxu0 %v744
        %820 = vmatpush1.msra.mxu0 %v743
        %821 = vmatprep.subr.mxu0 %v746
        %822 = vmatpush1.msra.mxu0 %v745
        %823 = vmatprep.subr.mxu0 %v748
        %824 = vmatpush1.msra.mxu0 %v747
        %825 = vmatprep.subr.mxu0 %v750
        %826 = vmatpush1.msra.mxu0 %v749
        %827 = vmatprep.subr.mxu0 %v752
        %828 = vmatpush1.msra.mxu0 %v751
        %829 = vmatprep.subr.mxu0 %v754
        %830 = vmatpush1.msra.mxu0 %v753
        %831 = vmatprep.subr.mxu0 %v756
        %832 = vmatpush1.msra.mxu0 %v755
        %833 = vmatprep.subr.mxu0 %v758
        %834 = vmatpush1.msra.mxu0 %v757
        %835 = vmatprep.subr.mxu0 %v760
        %836 = vmatpush1.msra.mxu0 %v759
        %837 = vmatprep.subr.mxu0 %v762
        %838 = vmatpush1.msra.mxu0 %v761
        %839 = vmatprep.subr.mxu0 %v764
        %840 = vmatpush1.msra.mxu0 %v763
        %841 = vmatprep.subr.mxu0 %v766
        %842 = vmatpush1.msra.mxu0 %v765
        %843 = vmatprep.subr.mxu0 %v768
        %844 = vmatpush1.msra.mxu0 %v767
        %845 = vmatprep.subr.mxu0 %v770
        %846 = vmatpush1.msra.mxu0 %v769
        %847 = vmatprep.subr.mxu0 %v772
        %848 = vmatpush1.msra.mxu0 %v771
        %849 = vmatprep.subr.mxu0 %v774
        %850 = vmatpush1.msra.mxu0 %v773
        %851 = vmatprep.subr.mxu0 %v776
        %852 = vmatpush1.msra.mxu0 %v775
        %853 = vmatprep.subr.mxu0 %v778
        %854 = vmatpush1.msra.mxu0 %v777
        %855 = vmatprep.subr.mxu0 %v780
        %856 = vmatpush1.msra.mxu0 %v779
        %857 = vmatprep.subr.mxu0 %v782
        %858 = vmatpush1.msra.mxu0 %v781
        %859 = vmatprep.subr.mxu0 %v784
        %860 = vmatpush1.msra.mxu0 %v783
        %861 = vmatprep.subr.mxu0 %v786
        %862 = vmatpush1.msra.mxu0 %v785
        %863 = vmatprep.subr.mxu0 %v788
        %864 = vmatpush1.msra.mxu0 %v787
        %865 = vmatprep.subr.mxu0 %v790
        %866 = vmatpush1.msra.mxu0 %v789
        %867 = vmatprep.subr.mxu0 %v792
        %868 = vmatpush1.msra.mxu0 %v791
        %869 = vmatprep.subr.mxu0 %v794
        %870 = vmatpush1.msra.mxu0 %v793
        %871 = vmatprep.subr.mxu0 %v796
        %872 = vmatpush1.msra.mxu0 %v795
        %873 = vmatprep.subr.mxu0 %v798
        %874 = vmatpush1.msra.mxu0 %v797
        %875 = vmatprep.subr.mxu0 %v800
        %876 = vmatpush1.msra.mxu0 %v799
        %877 = vmatprep.subr.mxu0 %v802
        %878 = vmatpush1.msra.mxu0 %v801
        %879 = vmatprep.subr.mxu0 %v804
        %880 = vmatpush1.msra.mxu0 %v803
        %881 = vmatprep.subr.mxu0 %v806
        %882 = vmatpush1.msra.mxu0 %v805
        %883 = vmatprep.mubr.f32.mxu0 %v742
        %884 = vmatmul.mubr.f32.gmra.mrb[0].mxu0 %v741
        %v885 = vpop.f32.mrb[0].mxu0
        %v886 = vadd.f32 %v812, %v885
        %v887 = vpop.f32.mrb[0].mxu0
        %v888 = vadd.f32 %v816, %v887
        %889 = vdwg.mxu0
        %v890 = vxor.u32 %v886, 2147483648
        %v891 = vxor.u32 %v888, 2147483648
        %v892 = vmul.f32 %v890, 1.442695
        %v893 = vpow.pop %v892
        %v894 = vmul.f32 %v891, 1.442695
        %v895 = vpow.pop %v894
        %v896 = vadd.f32 %v893, 1.0
        %v897 = vadd.f32 %v895, 1.0
        %v898 = vrcp.pop %v896
        %v899 = vmul.f32 1.0, %v898
        %v900 = vrcp.pop %v897
        %v901 = vmul.f32 1.0, %v900
        %v902 = vmul.f32 %v899, 2.0
        %v903 = vmul.f32 %v901, 2.0
        %v904 = vmul.f32 %v739, %v902
        %v905 = vmul.f32 %v740, %v903
        %v906 = vmax.f32 %v736, 0.0
        %v907 = vld [vmem:[#allocation8] sm:$0xff]
        %v908 = vld [vmem:[#allocation8 + $0x8] sm:$0xff]
        %v909 = vld [vmem:[#allocation8 + $0x10] sm:$0xff]
        %v910 = vld [vmem:[#allocation8 + $0x18] sm:$0xff]
        %v911 = vld [vmem:[#allocation8 + $0x20] sm:$0xff]
        %v912 = vld [vmem:[#allocation8 + $0x28] sm:$0xff]
        %v913 = vld [vmem:[#allocation8 + $0x30] sm:$0xff]
        %v914 = vld [vmem:[#allocation8 + $0x38] sm:$0xff]
        %v915 = vld [vmem:[#allocation8 + $0x40] sm:$0xff]
        %v916 = vld [vmem:[#allocation8 + $0x48] sm:$0xff]
        %v917 = vld [vmem:[#allocation8 + $0x50] sm:$0xff]
        %v918 = vld [vmem:[#allocation8 + $0x58] sm:$0xff]
        %v919 = vld [vmem:[#allocation8 + $0x60] sm:$0xff]
        %v920 = vld [vmem:[#allocation8 + $0x68] sm:$0xff]
        %v921 = vld [vmem:[#allocation8 + $0x70] sm:$0xff]
        %v922 = vld [vmem:[#allocation8 + $0x78] sm:$0xff]
        %v923 = vld [vmem:[#allocation8 + $0x80] sm:$0xff]
        %v924 = vld [vmem:[#allocation8 + $0x88] sm:$0xff]
        %v925 = vld [vmem:[#allocation8 + $0x90] sm:$0xff]
        %v926 = vld [vmem:[#allocation8 + $0x98] sm:$0xff]
        %v927 = vld [vmem:[#allocation8 + $0xa0] sm:$0xff]
        %v928 = vld [vmem:[#allocation8 + $0xa8] sm:$0xff]
        %v929 = vld [vmem:[#allocation8 + $0xb0] sm:$0xff]
        %v930 = vld [vmem:[#allocation8 + $0xb8] sm:$0xff]
        %v931 = vld [vmem:[#allocation8 + $0xc0] sm:$0xff]
        %v932 = vld [vmem:[#allocation8 + $0xc8] sm:$0xff]
        %v933 = vld [vmem:[#allocation8 + $0xd0] sm:$0xff]
        %v934 = vld [vmem:[#allocation8 + $0xd8] sm:$0xff]
        %v935 = vld [vmem:[#allocation8 + $0xe0] sm:$0xff]
        %v936 = vld [vmem:[#allocation8 + $0xe8] sm:$0xff]
        %v937 = vld [vmem:[#allocation8 + $0xf0] sm:$0xff]
        %v938 = vld [vmem:[#allocation8 + $0xf8] sm:$0xff]
        %v939 = vld [vmem:[%s6] sm:$0x1]
        %v941 = vlaneseq
        %v942 = vshrl.u32 %v941, 7
        %v943 = vsub.s32 0, %v942
        %v944 = vrot.slane %v939, %v943
        %946 = vmatprep.subr.mxu0 0.0
        %947 = vmatpush1.msra.mxu0 %v907
        %948 = vmatprep.subr.mxu0 0.0
        %949 = vmatpush1.msra.mxu0 %v908
        %950 = vmatprep.subr.mxu0 0.0
        %951 = vmatpush1.msra.mxu0 %v909
        %952 = vmatprep.subr.mxu0 0.0
        %953 = vmatpush1.msra.mxu0 %v910
        %954 = vmatprep.subr.mxu0 0.0
        %955 = vmatpush1.msra.mxu0 %v911
        %956 = vmatprep.subr.mxu0 0.0
        %957 = vmatpush1.msra.mxu0 %v912
        %958 = vmatprep.subr.mxu0 0.0
        %959 = vmatpush1.msra.mxu0 %v913
        %960 = vmatprep.subr.mxu0 0.0
        %961 = vmatpush1.msra.mxu0 %v914
        %962 = vmatprep.subr.mxu0 0.0
        %963 = vmatpush1.msra.mxu0 %v915
        %964 = vmatprep.subr.mxu0 0.0
        %965 = vmatpush1.msra.mxu0 %v916
        %966 = vmatprep.subr.mxu0 0.0
        %967 = vmatpush1.msra.mxu0 %v917
        %968 = vmatprep.subr.mxu0 0.0
        %969 = vmatpush1.msra.mxu0 %v918
        %970 = vmatprep.subr.mxu0 0.0
        %971 = vmatpush1.msra.mxu0 %v919
        %972 = vmatprep.subr.mxu0 0.0
        %973 = vmatpush1.msra.mxu0 %v920
        %974 = vmatprep.subr.mxu0 0.0
        %975 = vmatpush1.msra.mxu0 %v921
        %976 = vmatprep.subr.mxu0 0.0
        %977 = vmatpush1.msra.mxu0 %v922
        %978 = vmatprep.subr.mxu0 0.0
        %979 = vmatpush1.msra.mxu0 %v923
        %980 = vmatprep.subr.mxu0 0.0
        %981 = vmatpush1.msra.mxu0 %v924
        %982 = vmatprep.subr.mxu0 0.0
        %983 = vmatpush1.msra.mxu0 %v925
        %984 = vmatprep.subr.mxu0 0.0
        %985 = vmatpush1.msra.mxu0 %v926
        %986 = vmatprep.subr.mxu0 0.0
        %987 = vmatpush1.msra.mxu0 %v927
        %988 = vmatprep.subr.mxu0 0.0
        %989 = vmatpush1.msra.mxu0 %v928
        %990 = vmatprep.subr.mxu0 0.0
        %991 = vmatpush1.msra.mxu0 %v929
        %992 = vmatprep.subr.mxu0 0.0
        %993 = vmatpush1.msra.mxu0 %v930
        %994 = vmatprep.subr.mxu0 0.0
        %995 = vmatpush1.msra.mxu0 %v931
        %996 = vmatprep.subr.mxu0 0.0
        %997 = vmatpush1.msra.mxu0 %v932
        %998 = vmatprep.subr.mxu0 0.0
        %999 = vmatpush1.msra.mxu0 %v933
        %1000 = vmatprep.subr.mxu0 0.0
        %1001 = vmatpush1.msra.mxu0 %v934
        %1002 = vmatprep.subr.mxu0 0.0
        %1003 = vmatpush1.msra.mxu0 %v935
        %1004 = vmatprep.subr.mxu0 0.0
        %1005 = vmatpush1.msra.mxu0 %v936
        %1006 = vmatprep.subr.mxu0 0.0
        %1007 = vmatpush1.msra.mxu0 %v937
        %1008 = vmatprep.subr.mxu0 0.0
        %1009 = vmatpush1.msra.mxu0 %v938
        %1010 = vmatprep.mubr.f32.mxu0 %v905
        %1011 = vmatmul.mubr.f32.gmra.mrb[0].mxu0 %v904
        %v1012 = vpop.f32.mrb[0].mxu0
        %v1013 = vadd.f32 %v944, %v1012
        %v1014 = vpop.f32.mrb[0].mxu0
        %1015 = vdwg.mxu0
        %v1016 = vmax.f32 %v1013, 0.0
        %v1017 = vld [vmem:[#allocation10] sm:$0xff]
        %v1018 = vld [vmem:[#allocation10 + $0x8] sm:$0xff]
        %v1019 = vld [vmem:[#allocation10 + $0x10] sm:$0xff]
        %v1020 = vld [vmem:[#allocation10 + $0x18] sm:$0xff]
        %v1021 = vld [vmem:[#allocation10 + $0x20] sm:$0xff]
        %v1022 = vld [vmem:[#allocation10 + $0x28] sm:$0xff]
        %v1023 = vld [vmem:[#allocation10 + $0x30] sm:$0xff]
        %v1024 = vld [vmem:[#allocation10 + $0x38] sm:$0xff]
        %v1025 = vld [vmem:[#allocation10 + $0x40] sm:$0xff]
        %v1026 = vld [vmem:[#allocation10 + $0x48] sm:$0xff]
        %v1027 = vld [vmem:[#allocation10 + $0x50] sm:$0xff]
        %v1028 = vld [vmem:[#allocation10 + $0x58] sm:$0xff]
        %v1029 = vld [vmem:[#allocation10 + $0x60] sm:$0xff]
        %v1030 = vld [vmem:[#allocation10 + $0x68] sm:$0xff]
        %v1031 = vld [vmem:[#allocation10 + $0x70] sm:$0xff]
        %v1032 = vld [vmem:[#allocation10 + $0x78] sm:$0xff]
        %v1033 = vld [vmem:[%s8] sm:$0x1]
        %v1035 = vlaneseq
        %v1036 = vshrl.u32 %v1035, 7
        %v1037 = vsub.s32 0, %v1036
        %v1038 = vrot.slane %v1033, %v1037
        %1040 = vmatprep.subr.mxu0 0.0
        %1041 = vmatpush1.msra.mxu0 %v1017
        %1042 = vmatprep.subr.mxu0 0.0
        %1043 = vmatpush1.msra.mxu0 %v1018
        %1044 = vmatprep.subr.mxu0 0.0
        %1045 = vmatpush1.msra.mxu0 %v1019
        %1046 = vmatprep.subr.mxu0 0.0
        %1047 = vmatpush1.msra.mxu0 %v1020
        %1048 = vmatprep.subr.mxu0 0.0
        %1049 = vmatpush1.msra.mxu0 %v1021
        %1050 = vmatprep.subr.mxu0 0.0
        %1051 = vmatpush1.msra.mxu0 %v1022
        %1052 = vmatprep.subr.mxu0 0.0
        %1053 = vmatpush1.msra.mxu0 %v1023
        %1054 = vmatprep.subr.mxu0 0.0
        %1055 = vmatpush1.msra.mxu0 %v1024
        %1056 = vmatprep.subr.mxu0 0.0
        %1057 = vmatpush1.msra.mxu0 %v1025
        %1058 = vmatprep.subr.mxu0 0.0
        %1059 = vmatpush1.msra.mxu0 %v1026
        %1060 = vmatprep.subr.mxu0 0.0
        %1061 = vmatpush1.msra.mxu0 %v1027
        %1062 = vmatprep.subr.mxu0 0.0
        %1063 = vmatpush1.msra.mxu0 %v1028
        %1064 = vmatprep.subr.mxu0 0.0
        %1065 = vmatpush1.msra.mxu0 %v1029
        %1066 = vmatprep.subr.mxu0 0.0
        %1067 = vmatpush1.msra.mxu0 %v1030
        %1068 = vmatprep.subr.mxu0 0.0
        %1069 = vmatpush1.msra.mxu0 %v1031
        %1070 = vmatprep.subr.mxu0 0.0
        %1071 = vmatpush1.msra.mxu0 %v1032
        %1072 = vmatprep.subr.mxu0 0.0
        %1073 = vmatpush1.msra.mxu0 0.0
        %1074 = vmatprep.subr.mxu0 0.0
        %1075 = vmatpush1.msra.mxu0 0.0
        %1076 = vmatprep.subr.mxu0 0.0
        %1077 = vmatpush1.msra.mxu0 0.0
        %1078 = vmatprep.subr.mxu0 0.0
        %1079 = vmatpush1.msra.mxu0 0.0
        %1080 = vmatprep.subr.mxu0 0.0
        %1081 = vmatpush1.msra.mxu0 0.0
        %1082 = vmatprep.subr.mxu0 0.0
        %1083 = vmatpush1.msra.mxu0 0.0
        %1084 = vmatprep.subr.mxu0 0.0
        %1085 = vmatpush1.msra.mxu0 0.0
        %1086 = vmatprep.subr.mxu0 0.0
        %1087 = vmatpush1.msra.mxu0 0.0
        %1088 = vmatprep.subr.mxu0 0.0
        %1089 = vmatpush1.msra.mxu0 0.0
        %1090 = vmatprep.subr.mxu0 0.0
        %1091 = vmatpush1.msra.mxu0 0.0
        %1092 = vmatprep.subr.mxu0 0.0
        %1093 = vmatpush1.msra.mxu0 0.0
        %1094 = vmatprep.subr.mxu0 0.0
        %1095 = vmatpush1.msra.mxu0 0.0
        %1096 = vmatprep.subr.mxu0 0.0
        %1097 = vmatpush1.msra.mxu0 0.0
        %1098 = vmatprep.subr.mxu0 0.0
        %1099 = vmatpush1.msra.mxu0 0.0
        %1100 = vmatprep.subr.mxu0 0.0
        %1101 = vmatpush1.msra.mxu0 0.0
        %1102 = vmatprep.subr.mxu0 0.0
        %1103 = vmatpush1.msra.mxu0 0.0
        %1104 = vmatprep.mubr.f32.mxu0 0.0
        %1105 = vmatmul.mubr.f32.gmra.mrb[0].mxu0 %v906
        %v1106 = vpop.f32.mrb[0].mxu0
        %v1107 = vadd.f32 %v1038, %v1106
        %v1108 = vpop.f32.mrb[0].mxu0
        %1109 = vdwg.mxu0
        %v1110 = vxor.u32 %v1107, 2147483648
        %v1111 = vmul.f32 %v1110, 1.442695
        %v1112 = vpow.pop %v1111
        %v1113 = vadd.f32 %v1112, 1.0
        %v1114 = vrcp.pop %v1113
        %v1115 = vmul.f32 1.0, %v1114
        %v1116 = vmul.f32 %v1115, 2.0
        %v1117 = vmul.f32 %v1016, %v1116
        %v1118 = vld [vmem:[#allocation11] sm:$0xff]
        %v1119 = vld [vmem:[#allocation11 + $0x8] sm:$0xff]
        %v1120 = vld [vmem:[#allocation11 + $0x10] sm:$0xff]
        %v1121 = vld [vmem:[#allocation11 + $0x18] sm:$0xff]
        %v1122 = vld [vmem:[#allocation11 + $0x20] sm:$0xff]
        %v1123 = vld [vmem:[#allocation11 + $0x28] sm:$0xff]
        %v1124 = vld [vmem:[#allocation11 + $0x30] sm:$0xff]
        %v1125 = vld [vmem:[#allocation11 + $0x38] sm:$0xff]
        %v1126 = vld [vmem:[#allocation11 + $0x40] sm:$0xff]
        %v1127 = vld [vmem:[#allocation11 + $0x48] sm:$0xff]
        %v1128 = vld [vmem:[#allocation11 + $0x50] sm:$0xff]
        %v1129 = vld [vmem:[#allocation11 + $0x58] sm:$0xff]
        %v1130 = vld [vmem:[#allocation11 + $0x60] sm:$0xff]
        %v1131 = vld [vmem:[#allocation11 + $0x68] sm:$0xff]
        %v1132 = vld [vmem:[#allocation11 + $0x70] sm:$0xff]
        %v1133 = vld [vmem:[#allocation11 + $0x78] sm:$0xff]
        %v1134 = vld [vmem:[%s10] sm:$0x1]
        %v1136 = vlaneseq
        %v1137 = vshrl.u32 %v1136, 7
        %v1138 = vsub.s32 0, %v1137
        %v1139 = vrot.slane %v1134, %v1138
        %1141 = vmatprep.subr.mxu0 0.0
        %1142 = vmatpush1.msra.mxu0 %v1118
        %1143 = vmatprep.subr.mxu0 0.0
        %1144 = vmatpush1.msra.mxu0 %v1119
        %1145 = vmatprep.subr.mxu0 0.0
        %1146 = vmatpush1.msra.mxu0 %v1120
        %1147 = vmatprep.subr.mxu0 0.0
        %1148 = vmatpush1.msra.mxu0 %v1121
        %1149 = vmatprep.subr.mxu0 0.0
        %1150 = vmatpush1.msra.mxu0 %v1122
        %1151 = vmatprep.subr.mxu0 0.0
        %1152 = vmatpush1.msra.mxu0 %v1123
        %1153 = vmatprep.subr.mxu0 0.0
        %1154 = vmatpush1.msra.mxu0 %v1124
        %1155 = vmatprep.subr.mxu0 0.0
        %1156 = vmatpush1.msra.mxu0 %v1125
        %1157 = vmatprep.subr.mxu0 0.0
        %1158 = vmatpush1.msra.mxu0 %v1126
        %1159 = vmatprep.subr.mxu0 0.0
        %1160 = vmatpush1.msra.mxu0 %v1127
        %1161 = vmatprep.subr.mxu0 0.0
        %1162 = vmatpush1.msra.mxu0 %v1128
        %1163 = vmatprep.subr.mxu0 0.0
        %1164 = vmatpush1.msra.mxu0 %v1129
        %1165 = vmatprep.subr.mxu0 0.0
        %1166 = vmatpush1.msra.mxu0 %v1130
        %1167 = vmatprep.subr.mxu0 0.0
        %1168 = vmatpush1.msra.mxu0 %v1131
        %1169 = vmatprep.subr.mxu0 0.0
        %1170 = vmatpush1.msra.mxu0 %v1132
        %1171 = vmatprep.subr.mxu0 0.0
        %1172 = vmatpush1.msra.mxu0 %v1133
        %1173 = vmatprep.subr.mxu0 0.0
        %1174 = vmatpush1.msra.mxu0 0.0
        %1175 = vmatprep.subr.mxu0 0.0
        %1176 = vmatpush1.msra.mxu0 0.0
        %1177 = vmatprep.subr.mxu0 0.0
        %1178 = vmatpush1.msra.mxu0 0.0
        %1179 = vmatprep.subr.mxu0 0.0
        %1180 = vmatpush1.msra.mxu0 0.0
        %1181 = vmatprep.subr.mxu0 0.0
        %1182 = vmatpush1.msra.mxu0 0.0
        %1183 = vmatprep.subr.mxu0 0.0
        %1184 = vmatpush1.msra.mxu0 0.0
        %1185 = vmatprep.subr.mxu0 0.0
        %1186 = vmatpush1.msra.mxu0 0.0
        %1187 = vmatprep.subr.mxu0 0.0
        %1188 = vmatpush1.msra.mxu0 0.0
        %1189 = vmatprep.subr.mxu0 0.0
        %1190 = vmatpush1.msra.mxu0 0.0
        %1191 = vmatprep.subr.mxu0 0.0
        %1192 = vmatpush1.msra.mxu0 0.0
        %1193 = vmatprep.subr.mxu0 0.0
        %1194 = vmatpush1.msra.mxu0 0.0
        %1195 = vmatprep.subr.mxu0 0.0
        %1196 = vmatpush1.msra.mxu0 0.0
        %1197 = vmatprep.subr.mxu0 0.0
        %1198 = vmatpush1.msra.mxu0 0.0
        %1199 = vmatprep.subr.mxu0 0.0
        %1200 = vmatpush1.msra.mxu0 0.0
        %1201 = vmatprep.subr.mxu0 0.0
        %1202 = vmatpush1.msra.mxu0 0.0
        %1203 = vmatprep.subr.mxu0 0.0
        %1204 = vmatpush1.msra.mxu0 0.0
        %1205 = vmatprep.mubr.f32.mxu0 0.0
        %1206 = vmatmul.mubr.f32.gmra.mrb[0].mxu0 %v1117
        %v1207 = vpop.f32.mrb[0].mxu0
        %v1208 = vadd.f32 %v1139, %v1207
        %v1209 = vpop.f32.mrb[0].mxu0
        %1210 = vdwg.mxu0
        %v1211 = vxor.u32 %v1208, 2147483648
        %v1212 = vmul.f32 %v1211, 1.442695
        %v1213 = vpow.pop %v1212
        %v1214 = vadd.f32 %v1213, 1.0
        %v1215 = vrcp.pop %v1214
        %v1216 = vmul.f32 1.0, %v1215
        %1217 = vst [vmem:[%s474] sm:$0xff] %v1216
        %s1218 = sand.u32 %s275, 1
        %s1219 = scalar_lea.sflag [#allocation4], %s1218
        %s1220 = sand.u32 %s275, 1
        %s1221 = smul.addr %s1220, 8
        %s1222 = scalar_lea.vmem [#allocation13], %s1221
        // Predicated region
        $region89: #{tpu_custom_call.1} parent=63 // pred_check
          %p1223 = pneg %p285
        $region90: #{tpu_custom_call.1} parent=63 // pred_check_branch
          %1225 = sbr.rel (%p1223) target = $region92
        $region91: #{tpu_custom_call.1} parent=63 // pred_region
          %s1227 = ssub.s32 128, 128
          %1228 = vsyncadd %s1219, %s1227
          %s1229 = smul.addr %s31, 128
          %s1230 = scalar_lea.hbm %s11, %s1229
          %s1232 = sshll.u32 %s1222, 4
          %s1233 = int_to_ptr.vmem [resolvable:$true] %s1232
          %1235 = dma.vmem_to_hbm [thread:$0]  %s1233, 128, %s1230, %s1219
        $region92: #{tpu_custom_call.1} parent=63 // pred_fallthru
          _
      $region64: #{tpu_custom_call.1} parent=5 // pred_fallthru
        _
      %p1236 = scmp.le.s32.totalorder 2, %s26
      // Predicated region
      $region93: #{tpu_custom_call.1} parent=5 // pred_check
        %p1237 = pneg %p1236
      $region94: #{tpu_custom_call.1} parent=5 // pred_check_branch
        %1239 = sbr.rel (%p1237) target = $region96
      $region95: #{tpu_custom_call.1} parent=5 // pred_region
        %s1240 = ssub.s32 %s26, 2
        // Predicated region
        $region97: #{tpu_custom_call.1} parent=95 // pred_check
          %p1241 = pneg %p291
        $region98: #{tpu_custom_call.1} parent=95 // pred_check_branch
          %1243 = sbr.rel (%p1241) target = $region100
        $region99: #{tpu_custom_call.1} parent=95 // pred_region
          %s1244 = sand.u32 %s276, 1
          %s1245 = scalar_lea.sflag [#allocation4], %s1244
          %s1246 = sand.u32 %s276, 1
          %s1247 = smul.addr %s1246, 8
          %s1248 = scalar_lea.vmem [#allocation13], %s1247
          %1249 = dma.done %s1245, 128
        $region100: #{tpu_custom_call.1} parent=95 // pred_fallthru
          _
      $region96: #{tpu_custom_call.1} parent=5 // pred_fallthru
        _
    $region6: #{tpu_custom_call.1} parent=1 // loop_footer
      %s30 = sadd.s32 1, %s26
    $region7: #{tpu_custom_call.1} parent=1 // loop_footer_branch
      %25 = sbr.rel target = $region3
    $region8: #{tpu_custom_call.1} parent=1 // loop_exit
      _
    %1250 = vsyncpa [#allocation3], 1
    %s1251 = scalar_lea.sflag [#allocation3], 1
    %1252 = vsyncpa %s1251, 1
    %1253 = vsyncpa [#allocation6], 1
    %1254 = vsyncpa [#allocation9], 1
    %1255 = vsyncpa [#allocation12], 1
    %1256 = vsyncpa [#allocation4], 1
    %s1257 = scalar_lea.sflag [#allocation4], 1
    %1258 = vsyncpa %s1257, 1

</llo_original>
